<compile_context>
chip_gen: v5e
topology: v5e:2x2
jax: 0.10.0
libtpu: 0.0.40
codegen_flags: <defaults>
</compile_context>

<pallas_src>
import jax
import jax.numpy as jnp
from jax.experimental import pallas as pl
from jax.experimental.pallas import tpu as pltpu

LANE = 128      # TPU lane width: pad every feature dim to a multiple of this
B_TILE = 256    # rows per grid step; tiny vs. VMEM even on v7x (64 MiB)


def mlp_kernel(x_ref, w1_ref, b1_ref, w2_ref, b2_ref, w3_ref, b3_ref, o_ref):
    # fc1 + sigmoid  (bf16 matmul, f32 accumulate, f32 elementwise)
    h = jnp.dot(x_ref[...], w1_ref[...], preferred_element_type=jnp.float32)
    h = jax.nn.sigmoid(h + b1_ref[...])
    # fc2 + sigmoid
    h = jnp.dot(h.astype(w2_ref.dtype), w2_ref[...],
                preferred_element_type=jnp.float32)
    h = jax.nn.sigmoid(h + b2_ref[...])
    # fc3 + sigmoid
    h = jnp.dot(h.astype(w3_ref.dtype), w3_ref[...],
                preferred_element_type=jnp.float32)
    h = jax.nn.sigmoid(h + b3_ref[...])
    o_ref[...] = h.astype(o_ref.dtype)


def _round_up(n, m):
    return ((n + m - 1) // m) * m


def _pad2(a, shape):
    return jnp.pad(a, [(0, s - d) for s, d in zip(shape, a.shape)])


def mlp_forward(x, w1, b1, w2, b2, w3, b3, *, b_tile=B_TILE):
    B, in_f = x.shape
    h1_f, h2_f, out_f = w1.shape[1], w2.shape[1], w3.shape[1]

    in_p = _round_up(in_f, LANE)
    h1_p = _round_up(h1_f, LANE)
    h2_p = _round_up(h2_f, LANE)
    out_p = _round_up(out_f, LANE)
    Bp = _round_up(max(B, 1), b_tile)

    # Pad once outside the kernel; weights padded with zero ROWS so padded
    # activation lanes (which become sigmoid(0)=0.5) contribute nothing.
    xp = _pad2(x, (Bp, in_p)).astype(jnp.bfloat16)
    w1p = _pad2(w1, (in_p, h1_p)).astype(jnp.bfloat16)
    w2p = _pad2(w2, (h1_p, h2_p)).astype(jnp.bfloat16)
    w3p = _pad2(w3, (h2_p, out_p)).astype(jnp.bfloat16)
    b1p = _pad2(b1.reshape(1, -1).astype(jnp.float32), (1, h1_p))
    b2p = _pad2(b2.reshape(1, -1).astype(jnp.float32), (1, h2_p))
    b3p = _pad2(b3.reshape(1, -1).astype(jnp.float32), (1, out_p))

    # Weights/biases: full-array blocks with a constant index_map -> resident
    # in VMEM across every batch-tile grid step.
    resident = lambda a: pl.BlockSpec(a.shape, lambda i: (0,) * a.ndim)

    out = pl.pallas_call(
        mlp_kernel,
        out_shape=jax.ShapeDtypeStruct((Bp, out_p), jnp.float32),
        grid=(Bp // b_tile,),
        in_specs=[
            pl.BlockSpec((b_tile, in_p), lambda i: (i, 0)),   # x: tiled on batch
            resident(w1p), resident(b1p),
            resident(w2p), resident(b2p),
            resident(w3p), resident(b3p),
        ],
        out_specs=pl.BlockSpec((b_tile, out_p), lambda i: (i, 0)),
        compiler_params=pltpu.CompilerParams(
            dimension_semantics=("parallel",)),   # 2x on v7x (2 TCs); no-op elsewhere
    )(xp, w1p, b1p, w2p, b2p, w3p, b3p)

    # Slice away batch + lane padding.
    return out[:B, :out_f]


def init_linear(key, in_f, out_f):
    # PyTorch nn.Linear default init: U(-1/sqrt(in_f), 1/sqrt(in_f))
    kw, kb = jax.random.split(key)
    bound = 1.0 / (in_f ** 0.5)
    # stored as (in_f, out_f) so forward is x @ W + b
    w = jax.random.uniform(kw, (in_f, out_f), jnp.float32, -bound, bound)
    b = jax.random.uniform(kb, (1, out_f), jnp.float32, -bound, bound)
    return w, b


if __name__ == "__main__":
    key = jax.random.PRNGKey(0)
    k_x, k1, k2, k3 = jax.random.split(key, 4)

    # Batch chosen to exercise both grid tiling (2 steps of 256) and the
    # batch/lane padding + slice-back path.
    B = 300
    x = jax.random.normal(k_x, (B, 13), jnp.float32)

    w1, b1 = init_linear(k1, 13, 24)
    w2, b2 = init_linear(k2, 24, 48)
    w3, b3 = init_linear(k3, 48, 51)

    out = mlp_forward(x, w1, b1, w2, b2, w3, b3)
    out = jax.block_until_ready(out)

    # Reference check in plain JAX f32 (same math as the PyTorch module).
    ref = jax.nn.sigmoid(x @ w1 + b1)
    ref = jax.nn.sigmoid(ref @ w2 + b2)
    ref = jax.nn.sigmoid(ref @ w3 + b3)
    assert out.shape == (B, 51)
    # bf16 MXU path + f32 accumulate: loose-but-tight-enough tolerance.
    assert jnp.max(jnp.abs(out - ref)) < 2e-2

    print("KERNEL_OK")
</pallas_src>

<mosaic_0001>
module attributes {stable_mosaic.version = 11 : i64} {
  func.func @mlp_kernel(%arg0: i32, %arg1: memref<256x128xbf16, #tpu.memory_space<vmem>>, %arg2: memref<128x128xbf16, #tpu.memory_space<vmem>>, %arg3: memref<1x128xf32, #tpu.memory_space<vmem>>, %arg4: memref<128x128xbf16, #tpu.memory_space<vmem>>, %arg5: memref<1x128xf32, #tpu.memory_space<vmem>>, %arg6: memref<128x128xbf16, #tpu.memory_space<vmem>>, %arg7: memref<1x128xf32, #tpu.memory_space<vmem>>, %arg8: memref<256x128xf32, #tpu.memory_space<vmem>>) attributes {dimension_semantics = [#tpu.dimension_semantics<parallel>], iteration_bounds = array<i64: 2>, scalar_prefetch = 0 : i64, scratch_operands = 0 : i64, tpu.core_type = #tpu.core_type<tc>, window_params = [{transform_indices = @transform_0, window_bounds = array<i64: 256, 128>}, {pipeline_mode = #tpu.pipeline_mode<synchronous>, transform_indices = @transform_1, window_bounds = array<i64: 128, 128>}, {pipeline_mode = #tpu.pipeline_mode<synchronous>, transform_indices = @transform_2, window_bounds = array<i64: 1, 128>}, {pipeline_mode = #tpu.pipeline_mode<synchronous>, transform_indices = @transform_3, window_bounds = array<i64: 128, 128>}, {pipeline_mode = #tpu.pipeline_mode<synchronous>, transform_indices = @transform_4, window_bounds = array<i64: 1, 128>}, {pipeline_mode = #tpu.pipeline_mode<synchronous>, transform_indices = @transform_5, window_bounds = array<i64: 128, 128>}, {pipeline_mode = #tpu.pipeline_mode<synchronous>, transform_indices = @transform_6, window_bounds = array<i64: 1, 128>}, {transform_indices = @transform_7, window_bounds = array<i64: 256, 128>}]} {
    %c0 = arith.constant 0 : index
    %c0_0 = arith.constant 0 : index
    %0 = vector.load %arg1[%c0, %c0_0] : memref<256x128xbf16, #tpu.memory_space<vmem>>, vector<256x128xbf16>
    %c0_1 = arith.constant 0 : index
    %c0_2 = arith.constant 0 : index
    %1 = vector.load %arg2[%c0_1, %c0_2] : memref<128x128xbf16, #tpu.memory_space<vmem>>, vector<128x128xbf16>
    %cst = arith.constant dense<0.000000e+00> : vector<256x128xf32>
    %2 = tpu.matmul %0, %1, %cst {dimension_numbers = #tpu.dot_dimension_numbers<[1], [0], [0], [1], [0, 0, 1, 1], [], []>} : vector<256x128xbf16>, vector<128x128xbf16>, vector<256x128xf32> -> vector<256x128xf32>
    %c0_3 = arith.constant 0 : index
    %c0_4 = arith.constant 0 : index
    %3 = vector.load %arg3[%c0_3, %c0_4] : memref<1x128xf32, #tpu.memory_space<vmem>>, vector<1x128xf32>
    %4 = vector.broadcast %3 : vector<1x128xf32> to vector<256x128xf32>
    %5 = arith.addf %2, %4 : vector<256x128xf32>
    %6 = arith.negf %5 : vector<256x128xf32>
    %7 = math.exp %6 : vector<256x128xf32>
    %cst_5 = arith.constant 1.000000e+00 : f32
    %8 = vector.broadcast %cst_5 : f32 to vector<256x128xf32>
    %9 = arith.addf %8, %7 : vector<256x128xf32>
    %10 = arith.divf %8, %9 : vector<256x128xf32>
    %11 = arith.truncf %10 : vector<256x128xf32> to vector<256x128xbf16>
    %c0_6 = arith.constant 0 : index
    %c0_7 = arith.constant 0 : index
    %12 = vector.load %arg4[%c0_6, %c0_7] : memref<128x128xbf16, #tpu.memory_space<vmem>>, vector<128x128xbf16>
    %cst_8 = arith.constant dense<0.000000e+00> : vector<256x128xf32>
    %13 = tpu.matmul %11, %12, %cst_8 {dimension_numbers = #tpu.dot_dimension_numbers<[1], [0], [0], [1], [0, 0, 1, 1], [], []>} : vector<256x128xbf16>, vector<128x128xbf16>, vector<256x128xf32> -> vector<256x128xf32>
    %c0_9 = arith.constant 0 : index
    %c0_10 = arith.constant 0 : index
    %14 = vector.load %arg5[%c0_9, %c0_10] : memref<1x128xf32, #tpu.memory_space<vmem>>, vector<1x128xf32>
    %15 = vector.broadcast %14 : vector<1x128xf32> to vector<256x128xf32>
    %16 = arith.addf %13, %15 : vector<256x128xf32>
    %17 = arith.negf %16 : vector<256x128xf32>
    %18 = math.exp %17 : vector<256x128xf32>
    %cst_11 = arith.constant 1.000000e+00 : f32
    %19 = vector.broadcast %cst_11 : f32 to vector<256x128xf32>
    %20 = arith.addf %19, %18 : vector<256x128xf32>
    %21 = arith.divf %19, %20 : vector<256x128xf32>
    %22 = arith.truncf %21 : vector<256x128xf32> to vector<256x128xbf16>
    %c0_12 = arith.constant 0 : index
    %c0_13 = arith.constant 0 : index
    %23 = vector.load %arg6[%c0_12, %c0_13] : memref<128x128xbf16, #tpu.memory_space<vmem>>, vector<128x128xbf16>
    %cst_14 = arith.constant dense<0.000000e+00> : vector<256x128xf32>
    %24 = tpu.matmul %22, %23, %cst_14 {dimension_numbers = #tpu.dot_dimension_numbers<[1], [0], [0], [1], [0, 0, 1, 1], [], []>} : vector<256x128xbf16>, vector<128x128xbf16>, vector<256x128xf32> -> vector<256x128xf32>
    %c0_15 = arith.constant 0 : index
    %c0_16 = arith.constant 0 : index
    %25 = vector.load %arg7[%c0_15, %c0_16] : memref<1x128xf32, #tpu.memory_space<vmem>>, vector<1x128xf32>
    %26 = vector.broadcast %25 : vector<1x128xf32> to vector<256x128xf32>
    %27 = arith.addf %24, %26 : vector<256x128xf32>
    %28 = arith.negf %27 : vector<256x128xf32>
    %29 = math.exp %28 : vector<256x128xf32>
    %cst_17 = arith.constant 1.000000e+00 : f32
    %30 = vector.broadcast %cst_17 : f32 to vector<256x128xf32>
    %31 = arith.addf %30, %29 : vector<256x128xf32>
    %32 = arith.divf %30, %31 : vector<256x128xf32>
    %c0_18 = arith.constant 0 : index
    %c0_19 = arith.constant 0 : index
    %33 = vector.load %arg8[%c0_18, %c0_19] : memref<256x128xf32, #tpu.memory_space<vmem>>, vector<256x128xf32>
    tpu.vector_store %arg8[%c0_18, %c0_19], %32 {strides = array<i32>} : memref<256x128xf32, #tpu.memory_space<vmem>>, vector<256x128xf32>,
    return
  }
  func.func @transform_0(%arg0: i32) -> (i32, i32) {
    %c0_i32 = arith.constant 0 : i32
    %c0_i32_0 = arith.constant 0 : i32
    return %arg0, %c0_i32 : i32, i32
  }
  func.func @transform_1(%arg0: i32) -> (i32, i32) {
    %c0_i32 = arith.constant 0 : i32
    %c0_i32_0 = arith.constant 0 : i32
    %c0_i32_1 = arith.constant 0 : i32
    return %c0_i32, %c0_i32_0 : i32, i32
  }
  func.func @transform_2(%arg0: i32) -> (i32, i32) {
    %c0_i32 = arith.constant 0 : i32
    %c0_i32_0 = arith.constant 0 : i32
    %c0_i32_1 = arith.constant 0 : i32
    return %c0_i32, %c0_i32_0 : i32, i32
  }
  func.func @transform_3(%arg0: i32) -> (i32, i32) {
    %c0_i32 = arith.constant 0 : i32
    %c0_i32_0 = arith.constant 0 : i32
    %c0_i32_1 = arith.constant 0 : i32
    return %c0_i32, %c0_i32_0 : i32, i32
  }
  func.func @transform_4(%arg0: i32) -> (i32, i32) {
    %c0_i32 = arith.constant 0 : i32
    %c0_i32_0 = arith.constant 0 : i32
    %c0_i32_1 = arith.constant 0 : i32
    return %c0_i32, %c0_i32_0 : i32, i32
  }
  func.func @transform_5(%arg0: i32) -> (i32, i32) {
    %c0_i32 = arith.constant 0 : i32
    %c0_i32_0 = arith.constant 0 : i32
    %c0_i32_1 = arith.constant 0 : i32
    return %c0_i32, %c0_i32_0 : i32, i32
  }
  func.func @transform_6(%arg0: i32) -> (i32, i32) {
    %c0_i32 = arith.constant 0 : i32
    %c0_i32_0 = arith.constant 0 : i32
    %c0_i32_1 = arith.constant 0 : i32
    return %c0_i32, %c0_i32_0 : i32, i32
  }
  func.func @transform_7(%arg0: i32) -> (i32, i32) {
    %c0_i32 = arith.constant 0 : i32
    %c0_i32_0 = arith.constant 0 : i32
    return %arg0, %c0_i32 : i32, i32
  }
}

</mosaic_0001>

<llo_original>
// kernel: tpu_custom_call.1
$region0: #{tpu_custom_call.1}
  #allocation0 [shape = 'u32[]', space=smem, size = 0x4, offset = 0x4, fixed_abs, tag = 'smem constant byte address 0x4 - core index']
  #allocation1 [shape = 'u32[72,128]{1,0:T(1,128)}', space=vmem, size = 0x9000, scoped, tag = 'internal scratch']
  %s0 = inlined_call_operand.hbm [shape: bf16[512,128], index: 0, kind: input, shape index: {}]
  %s1 = inlined_call_operand.hbm [shape: bf16[128,128], index: 1, kind: input, shape index: {}]
  %s2 = inlined_call_operand.vmem [shape: f32[1,128], index: 2, kind: input, shape index: {}]
  %s3 = inlined_call_operand.hbm [shape: bf16[128,128], index: 3, kind: input, shape index: {}]
  %s4 = inlined_call_operand.vmem [shape: f32[1,128], index: 4, kind: input, shape index: {}]
  %s5 = inlined_call_operand.hbm [shape: bf16[128,128], index: 5, kind: input, shape index: {}]
  %s6 = inlined_call_operand.vmem [shape: f32[1,128], index: 6, kind: input, shape index: {}]
  %s7 = inlined_call_operand.hbm [shape: f32[512,128], index: 7, kind: output, shape index: {}]
  %s8 = sld [smem:[#allocation0]]
  $region77: #{tpu_custom_call.1} parent=0
    _
  %s10 = ssub.s32 1, %s8
  %s11 = scalar_select 0, %s10, %s8
  $region1: #{tpu_custom_call.1} parent=0
    #allocation2 [shape = 'u8[131072]{0}', space=vmem, size = 0x20000, scoped, tag = 'input window, operand 0']
    #allocation3 [shape = 's32[2]{0}', space=sflag, size = 0x8, scoped, tag = 'scoped memory for tpu_custom_call.1']
    #allocation4 [shape = 's32[2]{0}', space=sflag, size = 0x8, scoped, tag = 'scoped memory for tpu_custom_call.1']
    #allocation5 [shape = 'u8[32768]{0}', space=vmem, size = 0x8000, scoped, tag = 'input window, operand 1, single buffered']
    #allocation6 [shape = 's32[1]{0}', space=sflag, size = 0x4, scoped, tag = 'scoped memory for tpu_custom_call.1']
    #allocation7 [shape = 'u8[32768]{0}', space=vmem, size = 0x8000, scoped, tag = 'input window, operand 3, single buffered']
    #allocation8 [shape = 'u8[32768]{0}', space=vmem, size = 0x8000, scoped, tag = 'input window, operand 5, single buffered']
    #allocation9 [shape = 's32[1]{0}', space=sflag, size = 0x4, scoped, tag = 'scoped memory for tpu_custom_call.1']
    #allocation10 [shape = 'u8[262144]{0}', space=vmem, size = 0x40000, scoped, tag = 'output window, operand 0']
    %12 = vsyncpa [#allocation3], 0
    %s13 = scalar_lea.sflag [#allocation3], 1
    %14 = vsyncpa %s13, 0
    %15 = vsyncpa [#allocation6], 0
    %16 = vsyncpa [#allocation9], 0
    %17 = vsyncpa [#allocation4], 0
    %s18 = scalar_lea.sflag [#allocation4], 1
    %19 = vsyncpa %s18, 0
    loop: start=0, step=1, limit=4
    $region2: #{tpu_custom_call.1} parent=1 // loop_pre_header
      _
    $region3: #{tpu_custom_call.1} parent=1 // loop_header
      %s21 = sphi 0, %s25
      %p22 = scmp.ge.s32.totalorder %s21, 4
      %s31 = sphi 0, %s33
      %s34 = sphi 0, %s31
      %s35 = sphi 0, %s34
      %s51 = sphi 0, %s35
      %s55 = sphi 0, %s55
      %s57 = sphi 0, %s55
      %s58 = sphi 0, %s57
      %s72 = sphi 0, %s58
      %s76 = sphi 0, %s76
      %s78 = sphi 0, %s76
      %s79 = sphi 0, %s78
      %s93 = sphi 0, %s79
      %s97 = sphi 0, %s97
      %s99 = sphi 0, %s97
      %s100 = sphi 0, %s99
      %s114 = sphi 0, %s100
      %s118 = sphi 0, %s118
      %s120 = sphi 0, %s118
      %s121 = sphi 0, %s120
      %s135 = sphi 0, %s121
      %s139 = sphi 0, %s139
      %s141 = sphi 0, %s139
      %s142 = sphi 0, %s141
      %s156 = sphi 0, %s142
      %s160 = sphi 0, %s160
      %s162 = sphi 0, %s160
      %s163 = sphi 0, %s162
      %s177 = sphi 0, %s163
      %s183 = sphi 0, %s185
      %s186 = sphi 0, %s183
      %s187 = sphi 0, %s186
      %s203 = sphi 0, %s187
    $region4: #{tpu_custom_call.1} parent=1 // loop_header_branch
      %24 = sbr.rel (%p22) target = $region8
    $region5: #{tpu_custom_call.1} parent=1 // loop_body
      %s26 = ssub.s32 %s21, 1
      %s27 = ssub.s32 %s21, 2
      %s28 = sadd.s32 %s21, 1
      %s29 = ssub.s32 %s21, %s28
      %p30 = scmp.eq.s32.totalorder %s29, 0
      %s32 = sadd.s32 %s31, 1
      %s33 = scalar_select %p30, %s31, %s32
      %p36 = pneg %p30
      %p37 = scmp.eq.s32.totalorder %s21, 1
      %p38 = por %p36, %p37
      %p39 = scmp.ne.s32.totalorder %s31, %s34
      %p40 = scmp.eq.s32.totalorder %s21, 0
      %p41 = por %p39, %p40
      %p42 = scmp.ne.s32.totalorder %s31, %s34
      %p43 = scmp.eq.s32.totalorder %s26, 1
      %p44 = por %p42, %p43
      %p45 = scmp.ne.s32.totalorder %s34, %s35
      %p46 = scmp.eq.s32.totalorder %s26, 0
      %p47 = por %p45, %p46
      %p48 = scmp.ne.s32.totalorder %s34, %s35
      %p49 = scmp.eq.s32.totalorder %s27, 1
      %p50 = por %p48, %p49
      %p52 = scmp.ne.s32.totalorder %s35, %s51
      %p53 = scmp.eq.s32.totalorder %s27, 0
      %p54 = por %p52, %p53
      %s56 = sadd.s32 %s55, 1
      %p59 = scmp.eq.s32.totalorder %s21, 1
      %p60 = scmp.ne.s32.totalorder %s55, %s57
      %p61 = scmp.eq.s32.totalorder %s21, 0
      %p62 = por %p60, %p61
      %p63 = scmp.ne.s32.totalorder %s55, %s57
      %p64 = scmp.eq.s32.totalorder %s26, 1
      %p65 = por %p63, %p64
      %p66 = scmp.ne.s32.totalorder %s57, %s58
      %p67 = scmp.eq.s32.totalorder %s26, 0
      %p68 = por %p66, %p67
      %p69 = scmp.ne.s32.totalorder %s57, %s58
      %p70 = scmp.eq.s32.totalorder %s27, 1
      %p71 = por %p69, %p70
      %p73 = scmp.ne.s32.totalorder %s58, %s72
      %p74 = scmp.eq.s32.totalorder %s27, 0
      %p75 = por %p73, %p74
      %s77 = sadd.s32 %s76, 1
      %p80 = scmp.eq.s32.totalorder %s21, 1
      %p81 = scmp.ne.s32.totalorder %s76, %s78
      %p82 = scmp.eq.s32.totalorder %s21, 0
      %p83 = por %p81, %p82
      %p84 = scmp.ne.s32.totalorder %s76, %s78
      %p85 = scmp.eq.s32.totalorder %s26, 1
      %p86 = por %p84, %p85
      %p87 = scmp.ne.s32.totalorder %s78, %s79
      %p88 = scmp.eq.s32.totalorder %s26, 0
      %p89 = por %p87, %p88
      %p90 = scmp.ne.s32.totalorder %s78, %s79
      %p91 = scmp.eq.s32.totalorder %s27, 1
      %p92 = por %p90, %p91
      %p94 = scmp.ne.s32.totalorder %s79, %s93
      %p95 = scmp.eq.s32.totalorder %s27, 0
      %p96 = por %p94, %p95
      %s98 = sadd.s32 %s97, 1
      %p101 = scmp.eq.s32.totalorder %s21, 1
      %p102 = scmp.ne.s32.totalorder %s97, %s99
      %p103 = scmp.eq.s32.totalorder %s21, 0
      %p104 = por %p102, %p103
      %p105 = scmp.ne.s32.totalorder %s97, %s99
      %p106 = scmp.eq.s32.totalorder %s26, 1
      %p107 = por %p105, %p106
      %p108 = scmp.ne.s32.totalorder %s99, %s100
      %p109 = scmp.eq.s32.totalorder %s26, 0
      %p110 = por %p108, %p109
      %p111 = scmp.ne.s32.totalorder %s99, %s100
      %p112 = scmp.eq.s32.totalorder %s27, 1
      %p113 = por %p111, %p112
      %p115 = scmp.ne.s32.totalorder %s100, %s114
      %p116 = scmp.eq.s32.totalorder %s27, 0
      %p117 = por %p115, %p116
      %s119 = sadd.s32 %s118, 1
      %p122 = scmp.eq.s32.totalorder %s21, 1
      %p123 = scmp.ne.s32.totalorder %s118, %s120
      %p124 = scmp.eq.s32.totalorder %s21, 0
      %p125 = por %p123, %p124
      %p126 = scmp.ne.s32.totalorder %s118, %s120
      %p127 = scmp.eq.s32.totalorder %s26, 1
      %p128 = por %p126, %p127
      %p129 = scmp.ne.s32.totalorder %s120, %s121
      %p130 = scmp.eq.s32.totalorder %s26, 0
      %p131 = por %p129, %p130
      %p132 = scmp.ne.s32.totalorder %s120, %s121
      %p133 = scmp.eq.s32.totalorder %s27, 1
      %p134 = por %p132, %p133
      %p136 = scmp.ne.s32.totalorder %s121, %s135
      %p137 = scmp.eq.s32.totalorder %s27, 0
      %p138 = por %p136, %p137
      %s140 = sadd.s32 %s139, 1
      %p143 = scmp.eq.s32.totalorder %s21, 1
      %p144 = scmp.ne.s32.totalorder %s139, %s141
      %p145 = scmp.eq.s32.totalorder %s21, 0
      %p146 = por %p144, %p145
      %p147 = scmp.ne.s32.totalorder %s139, %s141
      %p148 = scmp.eq.s32.totalorder %s26, 1
      %p149 = por %p147, %p148
      %p150 = scmp.ne.s32.totalorder %s141, %s142
      %p151 = scmp.eq.s32.totalorder %s26, 0
      %p152 = por %p150, %p151
      %p153 = scmp.ne.s32.totalorder %s141, %s142
      %p154 = scmp.eq.s32.totalorder %s27, 1
      %p155 = por %p153, %p154
      %p157 = scmp.ne.s32.totalorder %s142, %s156
      %p158 = scmp.eq.s32.totalorder %s27, 0
      %p159 = por %p157, %p158
      %s161 = sadd.s32 %s160, 1
      %p164 = scmp.eq.s32.totalorder %s21, 1
      %p165 = scmp.ne.s32.totalorder %s160, %s162
      %p166 = scmp.eq.s32.totalorder %s21, 0
      %p167 = por %p165, %p166
      %p168 = scmp.ne.s32.totalorder %s160, %s162
      %p169 = scmp.eq.s32.totalorder %s26, 1
      %p170 = por %p168, %p169
      %p171 = scmp.ne.s32.totalorder %s162, %s163
      %p172 = scmp.eq.s32.totalorder %s26, 0
      %p173 = por %p171, %p172
      %p174 = scmp.ne.s32.totalorder %s162, %s163
      %p175 = scmp.eq.s32.totalorder %s27, 1
      %p176 = por %p174, %p175
      %p178 = scmp.ne.s32.totalorder %s163, %s177
      %p179 = scmp.eq.s32.totalorder %s27, 0
      %p180 = por %p178, %p179
      %s181 = ssub.s32 %s21, %s28
      %p182 = scmp.eq.s32.totalorder %s181, 0
      %s184 = sadd.s32 %s183, 1
      %s185 = scalar_select %p182, %s183, %s184
      %p188 = pneg %p182
      %p189 = scmp.eq.s32.totalorder %s21, 1
      %p190 = por %p188, %p189
      %p191 = scmp.ne.s32.totalorder %s183, %s186
      %p192 = scmp.eq.s32.totalorder %s21, 0
      %p193 = por %p191, %p192
      %p194 = scmp.ne.s32.totalorder %s183, %s186
      %p195 = scmp.eq.s32.totalorder %s26, 1
      %p196 = por %p194, %p195
      %p197 = scmp.ne.s32.totalorder %s186, %s187
      %p198 = scmp.eq.s32.totalorder %s26, 0
      %p199 = por %p197, %p198
      %p200 = scmp.ne.s32.totalorder %s186, %s187
      %p201 = scmp.eq.s32.totalorder %s27, 1
      %p202 = por %p200, %p201
      %p204 = scmp.ne.s32.totalorder %s187, %s203
      %p205 = scmp.eq.s32.totalorder %s27, 0
      %p206 = por %p204, %p205
      %p207 = scmp.le.s32.totalorder 1, %s21
      %p208 = scmp.lt.s32.totalorder %s21, 3
      %p209 = pnand %p207, %p208
      %p210 = pneg %p209
      // Predicated region
      $region9: #{tpu_custom_call.1} parent=5 // pred_check
        _
      $region10: #{tpu_custom_call.1} parent=5 // pred_check_branch
        %212 = sbr.rel (%p209) target = $region12
      $region11: #{tpu_custom_call.1} parent=5 // pred_region
        %s213 = ssub.s32 %s21, 1
        // Predicated region
        $region13: #{tpu_custom_call.1} parent=11 // pred_check
          %p214 = pneg %p68
        $region14: #{tpu_custom_call.1} parent=11 // pred_check_branch
          %216 = sbr.rel (%p214) target = $region16
        $region15: #{tpu_custom_call.1} parent=11 // pred_region
          %218 = vsyncadd [#allocation6], 0
          %s219 = sshll.u32 %s1, 4
          %s220 = int_to_ptr.hbm [resolvable:$true] %s219
          %s221 = sshll.u32 [#allocation5], 4
          %s222 = int_to_ptr.vmem [resolvable:$true] %s221
          %227 = dma.hbm_to_vmem [thread:$0]  %s220, 1024, %s222, [#allocation6], 64, 64, 4
        $region16: #{tpu_custom_call.1} parent=11 // pred_fallthru
          _
        // Predicated region
        $region17: #{tpu_custom_call.1} parent=11 // pred_check
          %p228 = pneg %p89
        $region18: #{tpu_custom_call.1} parent=11 // pred_check_branch
          %230 = sbr.rel (%p228) target = $region20
        $region19: #{tpu_custom_call.1} parent=11 // pred_region
          _
        $region20: #{tpu_custom_call.1} parent=11 // pred_fallthru
          _
        // Predicated region
        $region21: #{tpu_custom_call.1} parent=11 // pred_check
          %p231 = pneg %p110
        $region22: #{tpu_custom_call.1} parent=11 // pred_check_branch
          %233 = sbr.rel (%p231) target = $region24
        $region23: #{tpu_custom_call.1} parent=11 // pred_region
          %235 = vsyncadd [#allocation6], 0
          %s236 = sshll.u32 %s3, 4
          %s237 = int_to_ptr.hbm [resolvable:$true] %s236
          %s238 = sshll.u32 [#allocation7], 4
          %s239 = int_to_ptr.vmem [resolvable:$true] %s238
          %244 = dma.hbm_to_vmem [thread:$0]  %s237, 1024, %s239, [#allocation6], 64, 64, 4
        $region24: #{tpu_custom_call.1} parent=11 // pred_fallthru
          _
        // Predicated region
        $region25: #{tpu_custom_call.1} parent=11 // pred_check
          %p245 = pneg %p131
        $region26: #{tpu_custom_call.1} parent=11 // pred_check_branch
          %247 = sbr.rel (%p245) target = $region28
        $region27: #{tpu_custom_call.1} parent=11 // pred_region
          _
        $region28: #{tpu_custom_call.1} parent=11 // pred_fallthru
          _
        // Predicated region
        $region29: #{tpu_custom_call.1} parent=11 // pred_check
          %p248 = pneg %p152
        $region30: #{tpu_custom_call.1} parent=11 // pred_check_branch
          %250 = sbr.rel (%p248) target = $region32
        $region31: #{tpu_custom_call.1} parent=11 // pred_region
          %252 = vsyncadd [#allocation9], 0
          %s253 = sshll.u32 %s5, 4
          %s254 = int_to_ptr.hbm [resolvable:$true] %s253
          %s255 = sshll.u32 [#allocation8], 4
          %s256 = int_to_ptr.vmem [resolvable:$true] %s255
          %261 = dma.hbm_to_vmem [thread:$0]  %s254, 1024, %s256, [#allocation9], 64, 64, 4
        $region32: #{tpu_custom_call.1} parent=11 // pred_fallthru
          _
        // Predicated region
        $region33: #{tpu_custom_call.1} parent=11 // pred_check
          %p262 = pneg %p173
        $region34: #{tpu_custom_call.1} parent=11 // pred_check_branch
          %264 = sbr.rel (%p262) target = $region36
        $region35: #{tpu_custom_call.1} parent=11 // pred_region
          _
        $region36: #{tpu_custom_call.1} parent=11 // pred_fallthru
          _
      $region12: #{tpu_custom_call.1} parent=5 // pred_fallthru
        _
      %p265 = scmp.lt.s32.totalorder %s21, 2
      // Predicated region
      $region37: #{tpu_custom_call.1} parent=5 // pred_check
        %p266 = pneg %p265
      $region38: #{tpu_custom_call.1} parent=5 // pred_check_branch
        %268 = sbr.rel (%p266) target = $region40
      $region39: #{tpu_custom_call.1} parent=5 // pred_region
        // Predicated region
        $region41: #{tpu_custom_call.1} parent=39 // pred_check
          %p269 = pneg %p41
        $region42: #{tpu_custom_call.1} parent=39 // pred_check_branch
          %271 = sbr.rel (%p269) target = $region44
        $region43: #{tpu_custom_call.1} parent=39 // pred_region
          %s272 = sand.u32 %s31, 1
          %s273 = scalar_lea.sflag [#allocation3], %s272
          %s274 = sand.u32 %s31, 1
          %s275 = smul.addr %s274, 128
          %s276 = scalar_lea.vmem [#allocation2], %s275
          %s277 = smul.u32 32, %s21
          %279 = vsyncadd %s273, 0
          %s280 = smul.addr %s277, 4
          %s281 = scalar_lea.hbm %s0, %s280
          %s282 = sshll.u32 %s281, 4
          %s283 = int_to_ptr.hbm [resolvable:$true] %s282
          %s284 = sshll.u32 %s276, 4
          %s285 = int_to_ptr.vmem [resolvable:$true] %s284
          %290 = dma.hbm_to_vmem [thread:$0]  %s283, 2048, %s285, %s273, 64, 64, 4
        $region44: #{tpu_custom_call.1} parent=39 // pred_fallthru
          _
      $region40: #{tpu_custom_call.1} parent=5 // pred_fallthru
        _
      %p291 = scmp.le.s32.totalorder 1, %s21
      %p292 = scmp.lt.s32.totalorder %s21, 3
      %p293 = pnand %p291, %p292
      %p294 = pneg %p293
      // Predicated region
      $region45: #{tpu_custom_call.1} parent=5 // pred_check
        _
      $region46: #{tpu_custom_call.1} parent=5 // pred_check_branch
        %296 = sbr.rel (%p293) target = $region48
      $region47: #{tpu_custom_call.1} parent=5 // pred_region
        %s297 = ssub.s32 %s21, 1
        %s298 = sand.u32 %s34, 1
        %s299 = scalar_lea.sflag [#allocation3], %s298
        %s300 = sand.u32 %s34, 1
        %s301 = smul.addr %s300, 128
        %s302 = scalar_lea.vmem [#allocation2], %s301
        // Predicated region
        $region49: #{tpu_custom_call.1} parent=47 // pred_check
          %p303 = pneg %p47
        $region50: #{tpu_custom_call.1} parent=47 // pred_check_branch
          %305 = sbr.rel (%p303) target = $region52
        $region51: #{tpu_custom_call.1} parent=47 // pred_region
          %307 = dma.done %s299, 2048
        $region52: #{tpu_custom_call.1} parent=47 // pred_fallthru
          _
        // Predicated region
        $region53: #{tpu_custom_call.1} parent=47 // pred_check
          %p308 = pneg %p68
        $region54: #{tpu_custom_call.1} parent=47 // pred_check_branch
          %310 = sbr.rel (%p308) target = $region56
        $region55: #{tpu_custom_call.1} parent=47 // pred_region
          %312 = dma.done [#allocation6], 1024
        $region56: #{tpu_custom_call.1} parent=47 // pred_fallthru
          _
        // Predicated region
        $region57: #{tpu_custom_call.1} parent=47 // pred_check
          %p313 = pneg %p110
        $region58: #{tpu_custom_call.1} parent=47 // pred_check_branch
          %315 = sbr.rel (%p313) target = $region60
        $region59: #{tpu_custom_call.1} parent=47 // pred_region
          %317 = dma.done [#allocation6], 1024
        $region60: #{tpu_custom_call.1} parent=47 // pred_fallthru
          _
        // Predicated region
        $region61: #{tpu_custom_call.1} parent=47 // pred_check
          %p318 = pneg %p152
        $region62: #{tpu_custom_call.1} parent=47 // pred_check_branch
          %320 = sbr.rel (%p318) target = $region64
        $region63: #{tpu_custom_call.1} parent=47 // pred_region
          %322 = dma.done [#allocation9], 1024
        $region64: #{tpu_custom_call.1} parent=47 // pred_fallthru
          _
        %s323 = sand.u32 %s34, 1
        %s324 = scalar_lea.sflag [#allocation3], %s323
        %s325 = sand.u32 %s34, 1
        %s326 = smul.addr %s325, 128
        %s327 = scalar_lea.vmem [#allocation2], %s326
        %p328 = pneg %p47
        %p329 = pneg %p44
        %p330 = pneg %p68
        %p331 = pneg %p65
        %p332 = pneg %p89
        %p333 = pneg %p86
        %p334 = pneg %p110
        %p335 = pneg %p107
        %p336 = pneg %p131
        %p337 = pneg %p128
        %p338 = pneg %p152
        %p339 = pneg %p149
        %p340 = pneg %p173
        %p341 = pneg %p170
        %p342 = pneg %p199
        %p343 = pneg %p196
        %s344 = sand.u32 %s186, 1
        %s345 = scalar_lea.sflag [#allocation4], %s344
        %s346 = sand.u32 %s186, 1
        %s347 = smul.addr %s346, 256
        %s348 = scalar_lea.vmem [#allocation10], %s347
        %s349 = smul.u32 32, %s26
        %s350 = smul.u32 32, %s26
        %v351 = vld [vmem:[%s302] sm:$0xf]
        %v352 = vld [vmem:[%s302 + $0x4] sm:$0xf]
        %v353 = vld [vmem:[%s302 + $0x8] sm:$0xf]
        %v354 = vld [vmem:[%s302 + $0xc] sm:$0xf]
        %v355 = vld [vmem:[%s302 + $0x10] sm:$0xf]
        %v356 = vld [vmem:[%s302 + $0x14] sm:$0xf]
        %v357 = vld [vmem:[%s302 + $0x18] sm:$0xf]
        %v358 = vld [vmem:[%s302 + $0x1c] sm:$0xf]
        %v359 = vld [vmem:[%s302 + $0x20] sm:$0xf]
        %v360 = vld [vmem:[%s302 + $0x24] sm:$0xf]
        %v361 = vld [vmem:[%s302 + $0x28] sm:$0xf]
        %v362 = vld [vmem:[%s302 + $0x2c] sm:$0xf]
        %v363 = vld [vmem:[%s302 + $0x30] sm:$0xf]
        %v364 = vld [vmem:[%s302 + $0x34] sm:$0xf]
        %v365 = vld [vmem:[%s302 + $0x38] sm:$0xf]
        %v366 = vld [vmem:[%s302 + $0x3c] sm:$0xf]
        %v367 = vld [vmem:[%s302 + $0x40] sm:$0xf]
        %v368 = vld [vmem:[%s302 + $0x44] sm:$0xf]
        %v369 = vld [vmem:[%s302 + $0x48] sm:$0xf]
        %v370 = vld [vmem:[%s302 + $0x4c] sm:$0xf]
        %v371 = vld [vmem:[%s302 + $0x50] sm:$0xf]
        %v372 = vld [vmem:[%s302 + $0x54] sm:$0xf]
        %v373 = vld [vmem:[%s302 + $0x58] sm:$0xf]
        %v374 = vld [vmem:[%s302 + $0x5c] sm:$0xf]
        %v375 = vld [vmem:[%s302 + $0x60] sm:$0xf]
        %v376 = vld [vmem:[%s302 + $0x64] sm:$0xf]
        %v377 = vld [vmem:[%s302 + $0x68] sm:$0xf]
        %v378 = vld [vmem:[%s302 + $0x6c] sm:$0xf]
        %v379 = vld [vmem:[%s302 + $0x70] sm:$0xf]
        %v380 = vld [vmem:[%s302 + $0x74] sm:$0xf]
        %v381 = vld [vmem:[%s302 + $0x78] sm:$0xf]
        %v382 = vld [vmem:[%s302 + $0x7c] sm:$0xf]
        %v383 = vld [vmem:[#allocation5] sm:$0xf]
        %v384 = vld [vmem:[#allocation5 + $0x4] sm:$0xf]
        %v385 = vld [vmem:[#allocation5 + $0x8] sm:$0xf]
        %v386 = vld [vmem:[#allocation5 + $0xc] sm:$0xf]
        %v387 = vld [vmem:[#allocation5 + $0x10] sm:$0xf]
        %v388 = vld [vmem:[#allocation5 + $0x14] sm:$0xf]
        %v389 = vld [vmem:[#allocation5 + $0x18] sm:$0xf]
        %v390 = vld [vmem:[#allocation5 + $0x1c] sm:$0xf]
        %v391 = vld [vmem:[#allocation5 + $0x20] sm:$0xf]
        %v392 = vld [vmem:[#allocation5 + $0x24] sm:$0xf]
        %v393 = vld [vmem:[#allocation5 + $0x28] sm:$0xf]
        %v394 = vld [vmem:[#allocation5 + $0x2c] sm:$0xf]
        %v395 = vld [vmem:[#allocation5 + $0x30] sm:$0xf]
        %v396 = vld [vmem:[#allocation5 + $0x34] sm:$0xf]
        %v397 = vld [vmem:[#allocation5 + $0x38] sm:$0xf]
        %v398 = vld [vmem:[#allocation5 + $0x3c] sm:$0xf]
        %v399 = vld [vmem:[%s2] sm:$0x1]
        %v401 = vperm.slane %v399, 0
        %v435 = vunpack.c.l.b16 %v351
        %v436 = vunpack.c.l.b16 %v352
        %v437 = vunpack.c.l.b16 %v353
        %v438 = vunpack.c.l.b16 %v354
        %v439 = vunpack.c.l.b16 %v355
        %v440 = vunpack.c.l.b16 %v356
        %v441 = vunpack.c.l.b16 %v357
        %v442 = vunpack.c.l.b16 %v358
        %v443 = vunpack.c.l.b16 %v359
        %v444 = vunpack.c.l.b16 %v360
        %v445 = vunpack.c.l.b16 %v361
        %v446 = vunpack.c.l.b16 %v362
        %v447 = vunpack.c.l.b16 %v363
        %v448 = vunpack.c.l.b16 %v364
        %v449 = vunpack.c.l.b16 %v365
        %v450 = vunpack.c.l.b16 %v366
        %v451 = vunpack.c.l.b16 %v367
        %v452 = vunpack.c.l.b16 %v368
        %v453 = vunpack.c.l.b16 %v369
        %v454 = vunpack.c.l.b16 %v370
        %v455 = vunpack.c.l.b16 %v371
        %v456 = vunpack.c.l.b16 %v372
        %v457 = vunpack.c.l.b16 %v373
        %v458 = vunpack.c.l.b16 %v374
        %v459 = vunpack.c.l.b16 %v375
        %v460 = vunpack.c.l.b16 %v376
        %v461 = vunpack.c.l.b16 %v377
        %v462 = vunpack.c.l.b16 %v378
        %v463 = vunpack.c.l.b16 %v379
        %v464 = vunpack.c.l.b16 %v380
        %v465 = vunpack.c.l.b16 %v381
        %v466 = vunpack.c.l.b16 %v382
        %v467 = vpack.c.b16 %v436, %v435
        %v468 = vpack.c.b16 %v438, %v437
        %v469 = vpack.c.b16 %v440, %v439
        %v470 = vpack.c.b16 %v442, %v441
        %v471 = vpack.c.b16 %v444, %v443
        %v472 = vpack.c.b16 %v446, %v445
        %v473 = vpack.c.b16 %v448, %v447
        %v474 = vpack.c.b16 %v450, %v449
        %v475 = vpack.c.b16 %v452, %v451
        %v476 = vpack.c.b16 %v454, %v453
        %v477 = vpack.c.b16 %v456, %v455
        %v478 = vpack.c.b16 %v458, %v457
        %v479 = vpack.c.b16 %v460, %v459
        %v480 = vpack.c.b16 %v462, %v461
        %v481 = vpack.c.b16 %v464, %v463
        %v482 = vpack.c.b16 %v466, %v465
        %v515 = vunpack.c.l.b16 %v383
        %v516 = vunpack.c.l.b16 %v384
        %v517 = vunpack.c.l.b16 %v385
        %v518 = vunpack.c.l.b16 %v386
        %v519 = vunpack.c.l.b16 %v387
        %v520 = vunpack.c.l.b16 %v388
        %v521 = vunpack.c.l.b16 %v389
        %v522 = vunpack.c.l.b16 %v390
        %v523 = vunpack.c.l.b16 %v391
        %v524 = vunpack.c.l.b16 %v392
        %v525 = vunpack.c.l.b16 %v393
        %v526 = vunpack.c.l.b16 %v394
        %v527 = vunpack.c.l.b16 %v395
        %v528 = vunpack.c.l.b16 %v396
        %v529 = vunpack.c.l.b16 %v397
        %v530 = vunpack.c.l.b16 %v398
        %v531 = vpack.c.b16 %v516, %v515
        %v532 = vpack.c.b16 %v518, %v517
        %v533 = vpack.c.b16 %v520, %v519
        %v534 = vpack.c.b16 %v522, %v521
        %v535 = vpack.c.b16 %v524, %v523
        %v536 = vpack.c.b16 %v526, %v525
        %v537 = vpack.c.b16 %v528, %v527
        %v538 = vpack.c.b16 %v530, %v529
        %547 = vmatpush.bf16.msra.mxu0 %v538
        %548 = vmatpush.bf16.msra.mxu0 %v537
        %549 = vmatpush.bf16.msra.mxu0 %v536
        %550 = vmatpush.bf16.msra.mxu0 %v535
        %551 = vmatpush.bf16.msra.mxu0 %v534
        %552 = vmatpush.bf16.msra.mxu0 %v533
        %553 = vmatpush.bf16.msra.mxu0 %v532
        %554 = vmatpush.bf16.msra.mxu0 %v531
        %555 = vmatmul.bf16.gmra.mxu0 %v467
        %v556 = vpop.f32.mrf.mxu0
        %v557 = vadd.f32 %v401, %v556
        %v558 = vpop.f32.mrf.mxu0
        %v559 = vadd.f32 %v401, %v558
        %560 = vmatmul.bf16.gmra.mxu0 %v468
        %v561 = vpop.f32.mrf.mxu0
        %v562 = vadd.f32 %v401, %v561
        %v563 = vpop.f32.mrf.mxu0
        %v564 = vadd.f32 %v401, %v563
        %565 = vmatmul.bf16.gmra.mxu0 %v469
        %v566 = vpop.f32.mrf.mxu0
        %v567 = vadd.f32 %v401, %v566
        %v568 = vpop.f32.mrf.mxu0
        %v569 = vadd.f32 %v401, %v568
        %570 = vmatmul.bf16.gmra.mxu0 %v470
        %v571 = vpop.f32.mrf.mxu0
        %v572 = vadd.f32 %v401, %v571
        %v573 = vpop.f32.mrf.mxu0
        %v574 = vadd.f32 %v401, %v573
        %575 = vmatmul.bf16.gmra.mxu0 %v471
        %v576 = vpop.f32.mrf.mxu0
        %v577 = vadd.f32 %v401, %v576
        %v578 = vpop.f32.mrf.mxu0
        %v579 = vadd.f32 %v401, %v578
        %580 = vmatmul.bf16.gmra.mxu0 %v472
        %v581 = vpop.f32.mrf.mxu0
        %v582 = vadd.f32 %v401, %v581
        %v583 = vpop.f32.mrf.mxu0
        %v584 = vadd.f32 %v401, %v583
        %585 = vmatmul.bf16.gmra.mxu0 %v473
        %v586 = vpop.f32.mrf.mxu0
        %v587 = vadd.f32 %v401, %v586
        %v588 = vpop.f32.mrf.mxu0
        %v589 = vadd.f32 %v401, %v588
        %590 = vmatmul.bf16.gmra.mxu0 %v474
        %v591 = vpop.f32.mrf.mxu0
        %v592 = vadd.f32 %v401, %v591
        %v593 = vpop.f32.mrf.mxu0
        %v594 = vadd.f32 %v401, %v593
        %595 = vmatmul.bf16.gmra.mxu0 %v475
        %v596 = vpop.f32.mrf.mxu0
        %v597 = vadd.f32 %v401, %v596
        %v598 = vpop.f32.mrf.mxu0
        %v599 = vadd.f32 %v401, %v598
        %600 = vmatmul.bf16.gmra.mxu0 %v476
        %v601 = vpop.f32.mrf.mxu0
        %v602 = vadd.f32 %v401, %v601
        %v603 = vpop.f32.mrf.mxu0
        %v604 = vadd.f32 %v401, %v603
        %605 = vmatmul.bf16.gmra.mxu0 %v477
        %v606 = vpop.f32.mrf.mxu0
        %v607 = vadd.f32 %v401, %v606
        %v608 = vpop.f32.mrf.mxu0
        %v609 = vadd.f32 %v401, %v608
        %610 = vmatmul.bf16.gmra.mxu0 %v478
        %v611 = vpop.f32.mrf.mxu0
        %v612 = vadd.f32 %v401, %v611
        %v613 = vpop.f32.mrf.mxu0
        %v614 = vadd.f32 %v401, %v613
        %615 = vmatmul.bf16.gmra.mxu0 %v479
        %v616 = vpop.f32.mrf.mxu0
        %v617 = vadd.f32 %v401, %v616
        %v618 = vpop.f32.mrf.mxu0
        %v619 = vadd.f32 %v401, %v618
        %620 = vmatmul.bf16.gmra.mxu0 %v480
        %v621 = vpop.f32.mrf.mxu0
        %v622 = vadd.f32 %v401, %v621
        %v623 = vpop.f32.mrf.mxu0
        %v624 = vadd.f32 %v401, %v623
        %625 = vmatmul.bf16.gmra.mxu0 %v481
        %v626 = vpop.f32.mrf.mxu0
        %v627 = vadd.f32 %v401, %v626
        %v628 = vpop.f32.mrf.mxu0
        %v629 = vadd.f32 %v401, %v628
        %630 = vmatmul.bf16.gmra.mxu0 %v482
        %v631 = vpop.f32.mrf.mxu0
        %v632 = vadd.f32 %v401, %v631
        %v633 = vpop.f32.mrf.mxu0
        %v634 = vadd.f32 %v401, %v633
        %635 = vdwg.mxu0
        %v636 = vxor.u32 %v557, 2147483648
        %v637 = vxor.u32 %v559, 2147483648
        %v638 = vxor.u32 %v562, 2147483648
        %v639 = vxor.u32 %v564, 2147483648
        %v640 = vxor.u32 %v567, 2147483648
        %v641 = vxor.u32 %v569, 2147483648
        %v642 = vxor.u32 %v572, 2147483648
        %v643 = vxor.u32 %v574, 2147483648
        %v644 = vxor.u32 %v577, 2147483648
        %v645 = vxor.u32 %v579, 2147483648
        %v646 = vxor.u32 %v582, 2147483648
        %v647 = vxor.u32 %v584, 2147483648
        %v648 = vxor.u32 %v587, 2147483648
        %v649 = vxor.u32 %v589, 2147483648
        %v650 = vxor.u32 %v592, 2147483648
        %v651 = vxor.u32 %v594, 2147483648
        %v652 = vxor.u32 %v597, 2147483648
        %v653 = vxor.u32 %v599, 2147483648
        %v654 = vxor.u32 %v602, 2147483648
        %v655 = vxor.u32 %v604, 2147483648
        %v656 = vxor.u32 %v607, 2147483648
        %v657 = vxor.u32 %v609, 2147483648
        %v658 = vxor.u32 %v612, 2147483648
        %v659 = vxor.u32 %v614, 2147483648
        %v660 = vxor.u32 %v617, 2147483648
        %v661 = vxor.u32 %v619, 2147483648
        %v662 = vxor.u32 %v622, 2147483648
        %v663 = vxor.u32 %v624, 2147483648
        %v664 = vxor.u32 %v627, 2147483648
        %v665 = vxor.u32 %v629, 2147483648
        %v666 = vxor.u32 %v632, 2147483648
        %v667 = vxor.u32 %v634, 2147483648
        %v668 = vmul.f32 %v636, 1.442695
        %v669 = vpow.pop %v668
        %v670 = vmul.f32 %v637, 1.442695
        %v671 = vpow.pop %v670
        %v672 = vmul.f32 %v638, 1.442695
        %v673 = vpow.pop %v672
        %v674 = vmul.f32 %v639, 1.442695
        %v675 = vpow.pop %v674
        %v676 = vmul.f32 %v640, 1.442695
        %v677 = vpow.pop %v676
        %v678 = vmul.f32 %v641, 1.442695
        %v679 = vpow.pop %v678
        %v680 = vmul.f32 %v642, 1.442695
        %v681 = vpow.pop %v680
        %v682 = vmul.f32 %v643, 1.442695
        %v683 = vpow.pop %v682
        %v684 = vmul.f32 %v644, 1.442695
        %v685 = vpow.pop %v684
        %v686 = vmul.f32 %v645, 1.442695
        %v687 = vpow.pop %v686
        %v688 = vmul.f32 %v646, 1.442695
        %v689 = vpow.pop %v688
        %v690 = vmul.f32 %v647, 1.442695
        %v691 = vpow.pop %v690
        %v692 = vmul.f32 %v648, 1.442695
        %v693 = vpow.pop %v692
        %v694 = vmul.f32 %v649, 1.442695
        %v695 = vpow.pop %v694
        %v696 = vmul.f32 %v650, 1.442695
        %v697 = vpow.pop %v696
        %v698 = vmul.f32 %v651, 1.442695
        %v699 = vpow.pop %v698
        %v700 = vmul.f32 %v652, 1.442695
        %v701 = vpow.pop %v700
        %v702 = vmul.f32 %v653, 1.442695
        %v703 = vpow.pop %v702
        %v704 = vmul.f32 %v654, 1.442695
        %v705 = vpow.pop %v704
        %v706 = vmul.f32 %v655, 1.442695
        %v707 = vpow.pop %v706
        %v708 = vmul.f32 %v656, 1.442695
        %v709 = vpow.pop %v708
        %v710 = vmul.f32 %v657, 1.442695
        %v711 = vpow.pop %v710
        %v712 = vmul.f32 %v658, 1.442695
        %v713 = vpow.pop %v712
        %v714 = vmul.f32 %v659, 1.442695
        %v715 = vpow.pop %v714
        %v716 = vmul.f32 %v660, 1.442695
        %v717 = vpow.pop %v716
        %v718 = vmul.f32 %v661, 1.442695
        %v719 = vpow.pop %v718
        %v720 = vmul.f32 %v662, 1.442695
        %v721 = vpow.pop %v720
        %v722 = vmul.f32 %v663, 1.442695
        %v723 = vpow.pop %v722
        %v724 = vmul.f32 %v664, 1.442695
        %v725 = vpow.pop %v724
        %v726 = vmul.f32 %v665, 1.442695
        %v727 = vpow.pop %v726
        %v728 = vmul.f32 %v666, 1.442695
        %v729 = vpow.pop %v728
        %v730 = vmul.f32 %v667, 1.442695
        %v731 = vpow.pop %v730
        %v732 = vadd.f32 %v669, 1.0
        %v733 = vadd.f32 %v671, 1.0
        %v734 = vadd.f32 %v673, 1.0
        %v735 = vadd.f32 %v675, 1.0
        %v736 = vadd.f32 %v677, 1.0
        %v737 = vadd.f32 %v679, 1.0
        %v738 = vadd.f32 %v681, 1.0
        %v739 = vadd.f32 %v683, 1.0
        %v740 = vadd.f32 %v685, 1.0
        %v741 = vadd.f32 %v687, 1.0
        %v742 = vadd.f32 %v689, 1.0
        %v743 = vadd.f32 %v691, 1.0
        %v744 = vadd.f32 %v693, 1.0
        %v745 = vadd.f32 %v695, 1.0
        %v746 = vadd.f32 %v697, 1.0
        %v747 = vadd.f32 %v699, 1.0
        %v748 = vadd.f32 %v701, 1.0
        %v749 = vadd.f32 %v703, 1.0
        %v750 = vadd.f32 %v705, 1.0
        %v751 = vadd.f32 %v707, 1.0
        %v752 = vadd.f32 %v709, 1.0
        %v753 = vadd.f32 %v711, 1.0
        %v754 = vadd.f32 %v713, 1.0
        %v755 = vadd.f32 %v715, 1.0
        %v756 = vadd.f32 %v717, 1.0
        %v757 = vadd.f32 %v719, 1.0
        %v758 = vadd.f32 %v721, 1.0
        %v759 = vadd.f32 %v723, 1.0
        %v760 = vadd.f32 %v725, 1.0
        %v761 = vadd.f32 %v727, 1.0
        %v762 = vadd.f32 %v729, 1.0
        %v763 = vadd.f32 %v731, 1.0
        %v764 = vrcp.pop %v732
        %v765 = vmul.f32 %v732, %v764
        %v766 = vsub.f32 1.0, %v765
        %v767 = vmul.f32 %v764, %v766
        %v768 = vadd.f32 %v764, %v767
        %vm769 = vweird.f32 %v732
        %vm770 = vweird.f32 %v764
        %vm771 = vmor %vm769, %vm770
        %v772 = vsel %vm771, %v764, %v768
        %v773 = vand.u32 2147483647, %v732
        %vm774 = vcmp.eq.f32.partialorder %v773, 8.507059e+37
        %v775 = vand.u32 %v732, 2147483648
        %v776 = vor.u32 1.1754944e-38, %v775
        %v777 = vsel %vm774, %v776, %v772
        %v778 = vmul.f32 1.0, %v777
        %v779 = vrcp.pop %v733
        %v780 = vmul.f32 %v733, %v779
        %v781 = vsub.f32 1.0, %v780
        %v782 = vmul.f32 %v779, %v781
        %v783 = vadd.f32 %v779, %v782
        %vm784 = vweird.f32 %v733
        %vm785 = vweird.f32 %v779
        %vm786 = vmor %vm784, %vm785
        %v787 = vsel %vm786, %v779, %v783
        %v788 = vand.u32 2147483647, %v733
        %vm789 = vcmp.eq.f32.partialorder %v788, 8.507059e+37
        %v790 = vand.u32 %v733, 2147483648
        %v791 = vor.u32 1.1754944e-38, %v790
        %v792 = vsel %vm789, %v791, %v787
        %v793 = vmul.f32 1.0, %v792
        %v794 = vrcp.pop %v734
        %v795 = vmul.f32 %v734, %v794
        %v796 = vsub.f32 1.0, %v795
        %v797 = vmul.f32 %v794, %v796
        %v798 = vadd.f32 %v794, %v797
        %vm799 = vweird.f32 %v734
        %vm800 = vweird.f32 %v794
        %vm801 = vmor %vm799, %vm800
        %v802 = vsel %vm801, %v794, %v798
        %v803 = vand.u32 2147483647, %v734
        %vm804 = vcmp.eq.f32.partialorder %v803, 8.507059e+37
        %v805 = vand.u32 %v734, 2147483648
        %v806 = vor.u32 1.1754944e-38, %v805
        %v807 = vsel %vm804, %v806, %v802
        %v808 = vmul.f32 1.0, %v807
        %v809 = vrcp.pop %v735
        %v810 = vmul.f32 %v735, %v809
        %v811 = vsub.f32 1.0, %v810
        %v812 = vmul.f32 %v809, %v811
        %v813 = vadd.f32 %v809, %v812
        %vm814 = vweird.f32 %v735
        %vm815 = vweird.f32 %v809
        %vm816 = vmor %vm814, %vm815
        %v817 = vsel %vm816, %v809, %v813
        %v818 = vand.u32 2147483647, %v735
        %vm819 = vcmp.eq.f32.partialorder %v818, 8.507059e+37
        %v820 = vand.u32 %v735, 2147483648
        %v821 = vor.u32 1.1754944e-38, %v820
        %v822 = vsel %vm819, %v821, %v817
        %v823 = vmul.f32 1.0, %v822
        %v824 = vrcp.pop %v736
        %v825 = vmul.f32 %v736, %v824
        %v826 = vsub.f32 1.0, %v825
        %v827 = vmul.f32 %v824, %v826
        %v828 = vadd.f32 %v824, %v827
        %vm829 = vweird.f32 %v736
        %vm830 = vweird.f32 %v824
        %vm831 = vmor %vm829, %vm830
        %v832 = vsel %vm831, %v824, %v828
        %v833 = vand.u32 2147483647, %v736
        %vm834 = vcmp.eq.f32.partialorder %v833, 8.507059e+37
        %v835 = vand.u32 %v736, 2147483648
        %v836 = vor.u32 1.1754944e-38, %v835
        %v837 = vsel %vm834, %v836, %v832
        %v838 = vmul.f32 1.0, %v837
        %v839 = vrcp.pop %v737
        %v840 = vmul.f32 %v737, %v839
        %v841 = vsub.f32 1.0, %v840
        %v842 = vmul.f32 %v839, %v841
        %v843 = vadd.f32 %v839, %v842
        %vm844 = vweird.f32 %v737
        %vm845 = vweird.f32 %v839
        %vm846 = vmor %vm844, %vm845
        %v847 = vsel %vm846, %v839, %v843
        %v848 = vand.u32 2147483647, %v737
        %vm849 = vcmp.eq.f32.partialorder %v848, 8.507059e+37
        %v850 = vand.u32 %v737, 2147483648
        %v851 = vor.u32 1.1754944e-38, %v850
        %v852 = vsel %vm849, %v851, %v847
        %v853 = vmul.f32 1.0, %v852
        %v854 = vrcp.pop %v738
        %v855 = vmul.f32 %v738, %v854
        %v856 = vsub.f32 1.0, %v855
        %v857 = vmul.f32 %v854, %v856
        %v858 = vadd.f32 %v854, %v857
        %vm859 = vweird.f32 %v738
        %vm860 = vweird.f32 %v854
        %vm861 = vmor %vm859, %vm860
        %v862 = vsel %vm861, %v854, %v858
        %v863 = vand.u32 2147483647, %v738
        %vm864 = vcmp.eq.f32.partialorder %v863, 8.507059e+37
        %v865 = vand.u32 %v738, 2147483648
        %v866 = vor.u32 1.1754944e-38, %v865
        %v867 = vsel %vm864, %v866, %v862
        %v868 = vmul.f32 1.0, %v867
        %v869 = vrcp.pop %v739
        %v870 = vmul.f32 %v739, %v869
        %v871 = vsub.f32 1.0, %v870
        %v872 = vmul.f32 %v869, %v871
        %v873 = vadd.f32 %v869, %v872
        %vm874 = vweird.f32 %v739
        %vm875 = vweird.f32 %v869
        %vm876 = vmor %vm874, %vm875
        %v877 = vsel %vm876, %v869, %v873
        %v878 = vand.u32 2147483647, %v739
        %vm879 = vcmp.eq.f32.partialorder %v878, 8.507059e+37
        %v880 = vand.u32 %v739, 2147483648
        %v881 = vor.u32 1.1754944e-38, %v880
        %v882 = vsel %vm879, %v881, %v877
        %v883 = vmul.f32 1.0, %v882
        %v884 = vrcp.pop %v740
        %v885 = vmul.f32 %v740, %v884
        %v886 = vsub.f32 1.0, %v885
        %v887 = vmul.f32 %v884, %v886
        %v888 = vadd.f32 %v884, %v887
        %vm889 = vweird.f32 %v740
        %vm890 = vweird.f32 %v884
        %vm891 = vmor %vm889, %vm890
        %v892 = vsel %vm891, %v884, %v888
        %v893 = vand.u32 2147483647, %v740
        %vm894 = vcmp.eq.f32.partialorder %v893, 8.507059e+37
        %v895 = vand.u32 %v740, 2147483648
        %v896 = vor.u32 1.1754944e-38, %v895
        %v897 = vsel %vm894, %v896, %v892
        %v898 = vmul.f32 1.0, %v897
        %v899 = vrcp.pop %v741
        %v900 = vmul.f32 %v741, %v899
        %v901 = vsub.f32 1.0, %v900
        %v902 = vmul.f32 %v899, %v901
        %v903 = vadd.f32 %v899, %v902
        %vm904 = vweird.f32 %v741
        %vm905 = vweird.f32 %v899
        %vm906 = vmor %vm904, %vm905
        %v907 = vsel %vm906, %v899, %v903
        %v908 = vand.u32 2147483647, %v741
        %vm909 = vcmp.eq.f32.partialorder %v908, 8.507059e+37
        %v910 = vand.u32 %v741, 2147483648
        %v911 = vor.u32 1.1754944e-38, %v910
        %v912 = vsel %vm909, %v911, %v907
        %v913 = vmul.f32 1.0, %v912
        %v914 = vrcp.pop %v742
        %v915 = vmul.f32 %v742, %v914
        %v916 = vsub.f32 1.0, %v915
        %v917 = vmul.f32 %v914, %v916
        %v918 = vadd.f32 %v914, %v917
        %vm919 = vweird.f32 %v742
        %vm920 = vweird.f32 %v914
        %vm921 = vmor %vm919, %vm920
        %v922 = vsel %vm921, %v914, %v918
        %v923 = vand.u32 2147483647, %v742
        %vm924 = vcmp.eq.f32.partialorder %v923, 8.507059e+37
        %v925 = vand.u32 %v742, 2147483648
        %v926 = vor.u32 1.1754944e-38, %v925
        %v927 = vsel %vm924, %v926, %v922
        %v928 = vmul.f32 1.0, %v927
        %v929 = vrcp.pop %v743
        %v930 = vmul.f32 %v743, %v929
        %v931 = vsub.f32 1.0, %v930
        %v932 = vmul.f32 %v929, %v931
        %v933 = vadd.f32 %v929, %v932
        %vm934 = vweird.f32 %v743
        %vm935 = vweird.f32 %v929
        %vm936 = vmor %vm934, %vm935
        %v937 = vsel %vm936, %v929, %v933
        %v938 = vand.u32 2147483647, %v743
        %vm939 = vcmp.eq.f32.partialorder %v938, 8.507059e+37
        %v940 = vand.u32 %v743, 2147483648
        %v941 = vor.u32 1.1754944e-38, %v940
        %v942 = vsel %vm939, %v941, %v937
        %v943 = vmul.f32 1.0, %v942
        %v944 = vrcp.pop %v744
        %v945 = vmul.f32 %v744, %v944
        %v946 = vsub.f32 1.0, %v945
        %v947 = vmul.f32 %v944, %v946
        %v948 = vadd.f32 %v944, %v947
        %vm949 = vweird.f32 %v744
        %vm950 = vweird.f32 %v944
        %vm951 = vmor %vm949, %vm950
        %v952 = vsel %vm951, %v944, %v948
        %v953 = vand.u32 2147483647, %v744
        %vm954 = vcmp.eq.f32.partialorder %v953, 8.507059e+37
        %v955 = vand.u32 %v744, 2147483648
        %v956 = vor.u32 1.1754944e-38, %v955
        %v957 = vsel %vm954, %v956, %v952
        %v958 = vmul.f32 1.0, %v957
        %v959 = vrcp.pop %v745
        %v960 = vmul.f32 %v745, %v959
        %v961 = vsub.f32 1.0, %v960
        %v962 = vmul.f32 %v959, %v961
        %v963 = vadd.f32 %v959, %v962
        %vm964 = vweird.f32 %v745
        %vm965 = vweird.f32 %v959
        %vm966 = vmor %vm964, %vm965
        %v967 = vsel %vm966, %v959, %v963
        %v968 = vand.u32 2147483647, %v745
        %vm969 = vcmp.eq.f32.partialorder %v968, 8.507059e+37
        %v970 = vand.u32 %v745, 2147483648
        %v971 = vor.u32 1.1754944e-38, %v970
        %v972 = vsel %vm969, %v971, %v967
        %v973 = vmul.f32 1.0, %v972
        %v974 = vrcp.pop %v746
        %v975 = vmul.f32 %v746, %v974
        %v976 = vsub.f32 1.0, %v975
        %v977 = vmul.f32 %v974, %v976
        %v978 = vadd.f32 %v974, %v977
        %vm979 = vweird.f32 %v746
        %vm980 = vweird.f32 %v974
        %vm981 = vmor %vm979, %vm980
        %v982 = vsel %vm981, %v974, %v978
        %v983 = vand.u32 2147483647, %v746
        %vm984 = vcmp.eq.f32.partialorder %v983, 8.507059e+37
        %v985 = vand.u32 %v746, 2147483648
        %v986 = vor.u32 1.1754944e-38, %v985
        %v987 = vsel %vm984, %v986, %v982
        %v988 = vmul.f32 1.0, %v987
        %v989 = vrcp.pop %v747
        %v990 = vmul.f32 %v747, %v989
        %v991 = vsub.f32 1.0, %v990
        %v992 = vmul.f32 %v989, %v991
        %v993 = vadd.f32 %v989, %v992
        %vm994 = vweird.f32 %v747
        %vm995 = vweird.f32 %v989
        %vm996 = vmor %vm994, %vm995
        %v997 = vsel %vm996, %v989, %v993
        %v998 = vand.u32 2147483647, %v747
        %vm999 = vcmp.eq.f32.partialorder %v998, 8.507059e+37
        %v1000 = vand.u32 %v747, 2147483648
        %v1001 = vor.u32 1.1754944e-38, %v1000
        %v1002 = vsel %vm999, %v1001, %v997
        %v1003 = vmul.f32 1.0, %v1002
        %v1004 = vrcp.pop %v748
        %v1005 = vmul.f32 %v748, %v1004
        %v1006 = vsub.f32 1.0, %v1005
        %v1007 = vmul.f32 %v1004, %v1006
        %v1008 = vadd.f32 %v1004, %v1007
        %vm1009 = vweird.f32 %v748
        %vm1010 = vweird.f32 %v1004
        %vm1011 = vmor %vm1009, %vm1010
        %v1012 = vsel %vm1011, %v1004, %v1008
        %v1013 = vand.u32 2147483647, %v748
        %vm1014 = vcmp.eq.f32.partialorder %v1013, 8.507059e+37
        %v1015 = vand.u32 %v748, 2147483648
        %v1016 = vor.u32 1.1754944e-38, %v1015
        %v1017 = vsel %vm1014, %v1016, %v1012
        %v1018 = vmul.f32 1.0, %v1017
        %v1019 = vrcp.pop %v749
        %v1020 = vmul.f32 %v749, %v1019
        %v1021 = vsub.f32 1.0, %v1020
        %v1022 = vmul.f32 %v1019, %v1021
        %v1023 = vadd.f32 %v1019, %v1022
        %vm1024 = vweird.f32 %v749
        %vm1025 = vweird.f32 %v1019
        %vm1026 = vmor %vm1024, %vm1025
        %v1027 = vsel %vm1026, %v1019, %v1023
        %v1028 = vand.u32 2147483647, %v749
        %vm1029 = vcmp.eq.f32.partialorder %v1028, 8.507059e+37
        %v1030 = vand.u32 %v749, 2147483648
        %v1031 = vor.u32 1.1754944e-38, %v1030
        %v1032 = vsel %vm1029, %v1031, %v1027
        %v1033 = vmul.f32 1.0, %v1032
        %v1034 = vrcp.pop %v750
        %v1035 = vmul.f32 %v750, %v1034
        %v1036 = vsub.f32 1.0, %v1035
        %v1037 = vmul.f32 %v1034, %v1036
        %v1038 = vadd.f32 %v1034, %v1037
        %vm1039 = vweird.f32 %v750
        %vm1040 = vweird.f32 %v1034
        %vm1041 = vmor %vm1039, %vm1040
        %v1042 = vsel %vm1041, %v1034, %v1038
        %v1043 = vand.u32 2147483647, %v750
        %vm1044 = vcmp.eq.f32.partialorder %v1043, 8.507059e+37
        %v1045 = vand.u32 %v750, 2147483648
        %v1046 = vor.u32 1.1754944e-38, %v1045
        %v1047 = vsel %vm1044, %v1046, %v1042
        %v1048 = vmul.f32 1.0, %v1047
        %v1049 = vrcp.pop %v751
        %v1050 = vmul.f32 %v751, %v1049
        %v1051 = vsub.f32 1.0, %v1050
        %v1052 = vmul.f32 %v1049, %v1051
        %v1053 = vadd.f32 %v1049, %v1052
        %vm1054 = vweird.f32 %v751
        %vm1055 = vweird.f32 %v1049
        %vm1056 = vmor %vm1054, %vm1055
        %v1057 = vsel %vm1056, %v1049, %v1053
        %v1058 = vand.u32 2147483647, %v751
        %vm1059 = vcmp.eq.f32.partialorder %v1058, 8.507059e+37
        %v1060 = vand.u32 %v751, 2147483648
        %v1061 = vor.u32 1.1754944e-38, %v1060
        %v1062 = vsel %vm1059, %v1061, %v1057
        %v1063 = vmul.f32 1.0, %v1062
        %v1064 = vrcp.pop %v752
        %v1065 = vmul.f32 %v752, %v1064
        %v1066 = vsub.f32 1.0, %v1065
        %v1067 = vmul.f32 %v1064, %v1066
        %v1068 = vadd.f32 %v1064, %v1067
        %vm1069 = vweird.f32 %v752
        %vm1070 = vweird.f32 %v1064
        %vm1071 = vmor %vm1069, %vm1070
        %v1072 = vsel %vm1071, %v1064, %v1068
        %v1073 = vand.u32 2147483647, %v752
        %vm1074 = vcmp.eq.f32.partialorder %v1073, 8.507059e+37
        %v1075 = vand.u32 %v752, 2147483648
        %v1076 = vor.u32 1.1754944e-38, %v1075
        %v1077 = vsel %vm1074, %v1076, %v1072
        %v1078 = vmul.f32 1.0, %v1077
        %v1079 = vrcp.pop %v753
        %v1080 = vmul.f32 %v753, %v1079
        %v1081 = vsub.f32 1.0, %v1080
        %v1082 = vmul.f32 %v1079, %v1081
        %v1083 = vadd.f32 %v1079, %v1082
        %vm1084 = vweird.f32 %v753
        %vm1085 = vweird.f32 %v1079
        %vm1086 = vmor %vm1084, %vm1085
        %v1087 = vsel %vm1086, %v1079, %v1083
        %v1088 = vand.u32 2147483647, %v753
        %vm1089 = vcmp.eq.f32.partialorder %v1088, 8.507059e+37
        %v1090 = vand.u32 %v753, 2147483648
        %v1091 = vor.u32 1.1754944e-38, %v1090
        %v1092 = vsel %vm1089, %v1091, %v1087
        %v1093 = vmul.f32 1.0, %v1092
        %v1094 = vrcp.pop %v754
        %v1095 = vmul.f32 %v754, %v1094
        %v1096 = vsub.f32 1.0, %v1095
        %v1097 = vmul.f32 %v1094, %v1096
        %v1098 = vadd.f32 %v1094, %v1097
        %vm1099 = vweird.f32 %v754
        %vm1100 = vweird.f32 %v1094
        %vm1101 = vmor %vm1099, %vm1100
        %v1102 = vsel %vm1101, %v1094, %v1098
        %v1103 = vand.u32 2147483647, %v754
        %vm1104 = vcmp.eq.f32.partialorder %v1103, 8.507059e+37
        %v1105 = vand.u32 %v754, 2147483648
        %v1106 = vor.u32 1.1754944e-38, %v1105
        %v1107 = vsel %vm1104, %v1106, %v1102
        %v1108 = vmul.f32 1.0, %v1107
        %v1109 = vrcp.pop %v755
        %v1110 = vmul.f32 %v755, %v1109
        %v1111 = vsub.f32 1.0, %v1110
        %v1112 = vmul.f32 %v1109, %v1111
        %v1113 = vadd.f32 %v1109, %v1112
        %vm1114 = vweird.f32 %v755
        %vm1115 = vweird.f32 %v1109
        %vm1116 = vmor %vm1114, %vm1115
        %v1117 = vsel %vm1116, %v1109, %v1113
        %v1118 = vand.u32 2147483647, %v755
        %vm1119 = vcmp.eq.f32.partialorder %v1118, 8.507059e+37
        %v1120 = vand.u32 %v755, 2147483648
        %v1121 = vor.u32 1.1754944e-38, %v1120
        %v1122 = vsel %vm1119, %v1121, %v1117
        %v1123 = vmul.f32 1.0, %v1122
        %v1124 = vrcp.pop %v756
        %v1125 = vmul.f32 %v756, %v1124
        %v1126 = vsub.f32 1.0, %v1125
        %v1127 = vmul.f32 %v1124, %v1126
        %v1128 = vadd.f32 %v1124, %v1127
        %vm1129 = vweird.f32 %v756
        %vm1130 = vweird.f32 %v1124
        %vm1131 = vmor %vm1129, %vm1130
        %v1132 = vsel %vm1131, %v1124, %v1128
        %v1133 = vand.u32 2147483647, %v756
        %vm1134 = vcmp.eq.f32.partialorder %v1133, 8.507059e+37
        %v1135 = vand.u32 %v756, 2147483648
        %v1136 = vor.u32 1.1754944e-38, %v1135
        %v1137 = vsel %vm1134, %v1136, %v1132
        %v1138 = vmul.f32 1.0, %v1137
        %v1139 = vrcp.pop %v757
        %v1140 = vmul.f32 %v757, %v1139
        %v1141 = vsub.f32 1.0, %v1140
        %v1142 = vmul.f32 %v1139, %v1141
        %v1143 = vadd.f32 %v1139, %v1142
        %vm1144 = vweird.f32 %v757
        %vm1145 = vweird.f32 %v1139
        %vm1146 = vmor %vm1144, %vm1145
        %v1147 = vsel %vm1146, %v1139, %v1143
        %v1148 = vand.u32 2147483647, %v757
        %vm1149 = vcmp.eq.f32.partialorder %v1148, 8.507059e+37
        %v1150 = vand.u32 %v757, 2147483648
        %v1151 = vor.u32 1.1754944e-38, %v1150
        %v1152 = vsel %vm1149, %v1151, %v1147
        %v1153 = vmul.f32 1.0, %v1152
        %v1154 = vrcp.pop %v758
        %v1155 = vmul.f32 %v758, %v1154
        %v1156 = vsub.f32 1.0, %v1155
        %v1157 = vmul.f32 %v1154, %v1156
        %v1158 = vadd.f32 %v1154, %v1157
        %vm1159 = vweird.f32 %v758
        %vm1160 = vweird.f32 %v1154
        %vm1161 = vmor %vm1159, %vm1160
        %v1162 = vsel %vm1161, %v1154, %v1158
        %v1163 = vand.u32 2147483647, %v758
        %vm1164 = vcmp.eq.f32.partialorder %v1163, 8.507059e+37
        %v1165 = vand.u32 %v758, 2147483648
        %v1166 = vor.u32 1.1754944e-38, %v1165
        %v1167 = vsel %vm1164, %v1166, %v1162
        %v1168 = vmul.f32 1.0, %v1167
        %v1169 = vrcp.pop %v759
        %v1170 = vmul.f32 %v759, %v1169
        %v1171 = vsub.f32 1.0, %v1170
        %v1172 = vmul.f32 %v1169, %v1171
        %v1173 = vadd.f32 %v1169, %v1172
        %vm1174 = vweird.f32 %v759
        %vm1175 = vweird.f32 %v1169
        %vm1176 = vmor %vm1174, %vm1175
        %v1177 = vsel %vm1176, %v1169, %v1173
        %v1178 = vand.u32 2147483647, %v759
        %vm1179 = vcmp.eq.f32.partialorder %v1178, 8.507059e+37
        %v1180 = vand.u32 %v759, 2147483648
        %v1181 = vor.u32 1.1754944e-38, %v1180
        %v1182 = vsel %vm1179, %v1181, %v1177
        %v1183 = vmul.f32 1.0, %v1182
        %v1184 = vrcp.pop %v760
        %v1185 = vmul.f32 %v760, %v1184
        %v1186 = vsub.f32 1.0, %v1185
        %v1187 = vmul.f32 %v1184, %v1186
        %v1188 = vadd.f32 %v1184, %v1187
        %vm1189 = vweird.f32 %v760
        %vm1190 = vweird.f32 %v1184
        %vm1191 = vmor %vm1189, %vm1190
        %v1192 = vsel %vm1191, %v1184, %v1188
        %v1193 = vand.u32 2147483647, %v760
        %vm1194 = vcmp.eq.f32.partialorder %v1193, 8.507059e+37
        %v1195 = vand.u32 %v760, 2147483648
        %v1196 = vor.u32 1.1754944e-38, %v1195
        %v1197 = vsel %vm1194, %v1196, %v1192
        %v1198 = vmul.f32 1.0, %v1197
        %v1199 = vrcp.pop %v761
        %v1200 = vmul.f32 %v761, %v1199
        %v1201 = vsub.f32 1.0, %v1200
        %v1202 = vmul.f32 %v1199, %v1201
        %v1203 = vadd.f32 %v1199, %v1202
        %vm1204 = vweird.f32 %v761
        %vm1205 = vweird.f32 %v1199
        %vm1206 = vmor %vm1204, %vm1205
        %v1207 = vsel %vm1206, %v1199, %v1203
        %v1208 = vand.u32 2147483647, %v761
        %vm1209 = vcmp.eq.f32.partialorder %v1208, 8.507059e+37
        %v1210 = vand.u32 %v761, 2147483648
        %v1211 = vor.u32 1.1754944e-38, %v1210
        %v1212 = vsel %vm1209, %v1211, %v1207
        %v1213 = vmul.f32 1.0, %v1212
        %v1214 = vrcp.pop %v762
        %v1215 = vmul.f32 %v762, %v1214
        %v1216 = vsub.f32 1.0, %v1215
        %v1217 = vmul.f32 %v1214, %v1216
        %v1218 = vadd.f32 %v1214, %v1217
        %vm1219 = vweird.f32 %v762
        %vm1220 = vweird.f32 %v1214
        %vm1221 = vmor %vm1219, %vm1220
        %v1222 = vsel %vm1221, %v1214, %v1218
        %v1223 = vand.u32 2147483647, %v762
        %vm1224 = vcmp.eq.f32.partialorder %v1223, 8.507059e+37
        %v1225 = vand.u32 %v762, 2147483648
        %v1226 = vor.u32 1.1754944e-38, %v1225
        %v1227 = vsel %vm1224, %v1226, %v1222
        %v1228 = vmul.f32 1.0, %v1227
        %v1229 = vrcp.pop %v763
        %v1230 = vmul.f32 %v763, %v1229
        %v1231 = vsub.f32 1.0, %v1230
        %v1232 = vmul.f32 %v1229, %v1231
        %v1233 = vadd.f32 %v1229, %v1232
        %vm1234 = vweird.f32 %v763
        %vm1235 = vweird.f32 %v1229
        %vm1236 = vmor %vm1234, %vm1235
        %v1237 = vsel %vm1236, %v1229, %v1233
        %v1238 = vand.u32 2147483647, %v763
        %vm1239 = vcmp.eq.f32.partialorder %v1238, 8.507059e+37
        %v1240 = vand.u32 %v763, 2147483648
        %v1241 = vor.u32 1.1754944e-38, %v1240
        %v1242 = vsel %vm1239, %v1241, %v1237
        %v1243 = vmul.f32 1.0, %v1242
        %v1244 = vpack.c.bf16 %v793, %v778
        %v1245 = vpack.c.bf16 %v823, %v808
        %v1246 = vpack.c.bf16 %v853, %v838
        %v1247 = vpack.c.bf16 %v883, %v868
        %v1248 = vpack.c.bf16 %v913, %v898
        %v1249 = vpack.c.bf16 %v943, %v928
        %v1250 = vpack.c.bf16 %v973, %v958
        %v1251 = vpack.c.bf16 %v1003, %v988
        %v1252 = vpack.c.bf16 %v1033, %v1018
        %v1253 = vpack.c.bf16 %v1063, %v1048
        %v1254 = vpack.c.bf16 %v1093, %v1078
        %v1255 = vpack.c.bf16 %v1123, %v1108
        %v1256 = vpack.c.bf16 %v1153, %v1138
        %v1257 = vpack.c.bf16 %v1183, %v1168
        %v1258 = vpack.c.bf16 %v1213, %v1198
        %v1259 = vpack.c.bf16 %v1243, %v1228
        %v1260 = vld [vmem:[#allocation7] sm:$0xf]
        %v1261 = vld [vmem:[#allocation7 + $0x4] sm:$0xf]
        %v1262 = vld [vmem:[#allocation7 + $0x8] sm:$0xf]
        %v1263 = vld [vmem:[#allocation7 + $0xc] sm:$0xf]
        %v1264 = vld [vmem:[#allocation7 + $0x10] sm:$0xf]
        %v1265 = vld [vmem:[#allocation7 + $0x14] sm:$0xf]
        %v1266 = vld [vmem:[#allocation7 + $0x18] sm:$0xf]
        %v1267 = vld [vmem:[#allocation7 + $0x1c] sm:$0xf]
        %v1268 = vld [vmem:[#allocation7 + $0x20] sm:$0xf]
        %v1269 = vld [vmem:[#allocation7 + $0x24] sm:$0xf]
        %v1270 = vld [vmem:[#allocation7 + $0x28] sm:$0xf]
        %v1271 = vld [vmem:[#allocation7 + $0x2c] sm:$0xf]
        %v1272 = vld [vmem:[#allocation7 + $0x30] sm:$0xf]
        %v1273 = vld [vmem:[#allocation7 + $0x34] sm:$0xf]
        %v1274 = vld [vmem:[#allocation7 + $0x38] sm:$0xf]
        %v1275 = vld [vmem:[#allocation7 + $0x3c] sm:$0xf]
        %v1276 = vld [vmem:[%s4] sm:$0x1]
        %v1278 = vperm.slane %v1276, 0
        %v1296 = vunpack.c.l.b16 %v1260
        %v1297 = vunpack.c.l.b16 %v1261
        %v1298 = vunpack.c.l.b16 %v1262
        %v1299 = vunpack.c.l.b16 %v1263
        %v1300 = vunpack.c.l.b16 %v1264
        %v1301 = vunpack.c.l.b16 %v1265
        %v1302 = vunpack.c.l.b16 %v1266
        %v1303 = vunpack.c.l.b16 %v1267
        %v1304 = vunpack.c.l.b16 %v1268
        %v1305 = vunpack.c.l.b16 %v1269
        %v1306 = vunpack.c.l.b16 %v1270
        %v1307 = vunpack.c.l.b16 %v1271
        %v1308 = vunpack.c.l.b16 %v1272
        %v1309 = vunpack.c.l.b16 %v1273
        %v1310 = vunpack.c.l.b16 %v1274
        %v1311 = vunpack.c.l.b16 %v1275
        %v1312 = vpack.c.b16 %v1297, %v1296
        %v1313 = vpack.c.b16 %v1299, %v1298
        %v1314 = vpack.c.b16 %v1301, %v1300
        %v1315 = vpack.c.b16 %v1303, %v1302
        %v1316 = vpack.c.b16 %v1305, %v1304
        %v1317 = vpack.c.b16 %v1307, %v1306
        %v1318 = vpack.c.b16 %v1309, %v1308
        %v1319 = vpack.c.b16 %v1311, %v1310
        %1328 = vmatpush.bf16.msra.mxu0 %v1319
        %1329 = vmatpush.bf16.msra.mxu0 %v1318
        %1330 = vmatpush.bf16.msra.mxu0 %v1317
        %1331 = vmatpush.bf16.msra.mxu0 %v1316
        %1332 = vmatpush.bf16.msra.mxu0 %v1315
        %1333 = vmatpush.bf16.msra.mxu0 %v1314
        %1334 = vmatpush.bf16.msra.mxu0 %v1313
        %1335 = vmatpush.bf16.msra.mxu0 %v1312
        %1336 = vmatmul.bf16.gmra.mxu0 %v1244
        %v1337 = vpop.f32.mrf.mxu0
        %v1338 = vadd.f32 %v1278, %v1337
        %v1339 = vpop.f32.mrf.mxu0
        %v1340 = vadd.f32 %v1278, %v1339
        %1341 = vmatmul.bf16.gmra.mxu0 %v1245
        %v1342 = vpop.f32.mrf.mxu0
        %v1343 = vadd.f32 %v1278, %v1342
        %v1344 = vpop.f32.mrf.mxu0
        %v1345 = vadd.f32 %v1278, %v1344
        %1346 = vmatmul.bf16.gmra.mxu0 %v1246
        %v1347 = vpop.f32.mrf.mxu0
        %v1348 = vadd.f32 %v1278, %v1347
        %v1349 = vpop.f32.mrf.mxu0
        %v1350 = vadd.f32 %v1278, %v1349
        %1351 = vmatmul.bf16.gmra.mxu0 %v1247
        %v1352 = vpop.f32.mrf.mxu0
        %v1353 = vadd.f32 %v1278, %v1352
        %v1354 = vpop.f32.mrf.mxu0
        %v1355 = vadd.f32 %v1278, %v1354
        %1356 = vmatmul.bf16.gmra.mxu0 %v1248
        %v1357 = vpop.f32.mrf.mxu0
        %v1358 = vadd.f32 %v1278, %v1357
        %v1359 = vpop.f32.mrf.mxu0
        %v1360 = vadd.f32 %v1278, %v1359
        %1361 = vmatmul.bf16.gmra.mxu0 %v1249
        %v1362 = vpop.f32.mrf.mxu0
        %v1363 = vadd.f32 %v1278, %v1362
        %v1364 = vpop.f32.mrf.mxu0
        %v1365 = vadd.f32 %v1278, %v1364
        %1366 = vmatmul.bf16.gmra.mxu0 %v1250
        %v1367 = vpop.f32.mrf.mxu0
        %v1368 = vadd.f32 %v1278, %v1367
        %v1369 = vpop.f32.mrf.mxu0
        %v1370 = vadd.f32 %v1278, %v1369
        %1371 = vmatmul.bf16.gmra.mxu0 %v1251
        %v1372 = vpop.f32.mrf.mxu0
        %v1373 = vadd.f32 %v1278, %v1372
        %v1374 = vpop.f32.mrf.mxu0
        %v1375 = vadd.f32 %v1278, %v1374
        %1376 = vmatmul.bf16.gmra.mxu0 %v1252
        %v1377 = vpop.f32.mrf.mxu0
        %v1378 = vadd.f32 %v1278, %v1377
        %v1379 = vpop.f32.mrf.mxu0
        %v1380 = vadd.f32 %v1278, %v1379
        %1381 = vmatmul.bf16.gmra.mxu0 %v1253
        %v1382 = vpop.f32.mrf.mxu0
        %v1383 = vadd.f32 %v1278, %v1382
        %v1384 = vpop.f32.mrf.mxu0
        %v1385 = vadd.f32 %v1278, %v1384
        %1386 = vmatmul.bf16.gmra.mxu0 %v1254
        %v1387 = vpop.f32.mrf.mxu0
        %v1388 = vadd.f32 %v1278, %v1387
        %v1389 = vpop.f32.mrf.mxu0
        %v1390 = vadd.f32 %v1278, %v1389
        %1391 = vmatmul.bf16.gmra.mxu0 %v1255
        %v1392 = vpop.f32.mrf.mxu0
        %v1393 = vadd.f32 %v1278, %v1392
        %v1394 = vpop.f32.mrf.mxu0
        %v1395 = vadd.f32 %v1278, %v1394
        %1396 = vmatmul.bf16.gmra.mxu0 %v1256
        %v1397 = vpop.f32.mrf.mxu0
        %v1398 = vadd.f32 %v1278, %v1397
        %v1399 = vpop.f32.mrf.mxu0
        %v1400 = vadd.f32 %v1278, %v1399
        %1401 = vmatmul.bf16.gmra.mxu0 %v1257
        %v1402 = vpop.f32.mrf.mxu0
        %v1403 = vadd.f32 %v1278, %v1402
        %v1404 = vpop.f32.mrf.mxu0
        %v1405 = vadd.f32 %v1278, %v1404
        %1406 = vmatmul.bf16.gmra.mxu0 %v1258
        %v1407 = vpop.f32.mrf.mxu0
        %v1408 = vadd.f32 %v1278, %v1407
        %v1409 = vpop.f32.mrf.mxu0
        %v1410 = vadd.f32 %v1278, %v1409
        %1411 = vmatmul.bf16.gmra.mxu0 %v1259
        %v1412 = vpop.f32.mrf.mxu0
        %v1413 = vadd.f32 %v1278, %v1412
        %v1414 = vpop.f32.mrf.mxu0
        %v1415 = vadd.f32 %v1278, %v1414
        %1416 = vdwg.mxu0
        %v1417 = vxor.u32 %v1338, 2147483648
        %v1418 = vxor.u32 %v1340, 2147483648
        %v1419 = vxor.u32 %v1343, 2147483648
        %v1420 = vxor.u32 %v1345, 2147483648
        %v1421 = vxor.u32 %v1348, 2147483648
        %v1422 = vxor.u32 %v1350, 2147483648
        %v1423 = vxor.u32 %v1353, 2147483648
        %v1424 = vxor.u32 %v1355, 2147483648
        %v1425 = vxor.u32 %v1358, 2147483648
        %v1426 = vxor.u32 %v1360, 2147483648
        %v1427 = vxor.u32 %v1363, 2147483648
        %v1428 = vxor.u32 %v1365, 2147483648
        %v1429 = vxor.u32 %v1368, 2147483648
        %v1430 = vxor.u32 %v1370, 2147483648
        %v1431 = vxor.u32 %v1373, 2147483648
        %v1432 = vxor.u32 %v1375, 2147483648
        %v1433 = vxor.u32 %v1378, 2147483648
        %v1434 = vxor.u32 %v1380, 2147483648
        %v1435 = vxor.u32 %v1383, 2147483648
        %v1436 = vxor.u32 %v1385, 2147483648
        %v1437 = vxor.u32 %v1388, 2147483648
        %v1438 = vxor.u32 %v1390, 2147483648
        %v1439 = vxor.u32 %v1393, 2147483648
        %v1440 = vxor.u32 %v1395, 2147483648
        %v1441 = vxor.u32 %v1398, 2147483648
        %v1442 = vxor.u32 %v1400, 2147483648
        %v1443 = vxor.u32 %v1403, 2147483648
        %v1444 = vxor.u32 %v1405, 2147483648
        %v1445 = vxor.u32 %v1408, 2147483648
        %v1446 = vxor.u32 %v1410, 2147483648
        %v1447 = vxor.u32 %v1413, 2147483648
        %v1448 = vxor.u32 %v1415, 2147483648
        %v1449 = vmul.f32 %v1417, 1.442695
        %v1450 = vpow.pop %v1449
        %v1451 = vmul.f32 %v1418, 1.442695
        %v1452 = vpow.pop %v1451
        %v1453 = vmul.f32 %v1419, 1.442695
        %v1454 = vpow.pop %v1453
        %v1455 = vmul.f32 %v1420, 1.442695
        %v1456 = vpow.pop %v1455
        %v1457 = vmul.f32 %v1421, 1.442695
        %v1458 = vpow.pop %v1457
        %v1459 = vmul.f32 %v1422, 1.442695
        %v1460 = vpow.pop %v1459
        %v1461 = vmul.f32 %v1423, 1.442695
        %v1462 = vpow.pop %v1461
        %v1463 = vmul.f32 %v1424, 1.442695
        %v1464 = vpow.pop %v1463
        %v1465 = vmul.f32 %v1425, 1.442695
        %v1466 = vpow.pop %v1465
        %v1467 = vmul.f32 %v1426, 1.442695
        %v1468 = vpow.pop %v1467
        %v1469 = vmul.f32 %v1427, 1.442695
        %v1470 = vpow.pop %v1469
        %v1471 = vmul.f32 %v1428, 1.442695
        %v1472 = vpow.pop %v1471
        %v1473 = vmul.f32 %v1429, 1.442695
        %v1474 = vpow.pop %v1473
        %v1475 = vmul.f32 %v1430, 1.442695
        %v1476 = vpow.pop %v1475
        %v1477 = vmul.f32 %v1431, 1.442695
        %v1478 = vpow.pop %v1477
        %v1479 = vmul.f32 %v1432, 1.442695
        %v1480 = vpow.pop %v1479
        %v1481 = vmul.f32 %v1433, 1.442695
        %v1482 = vpow.pop %v1481
        %v1483 = vmul.f32 %v1434, 1.442695
        %v1484 = vpow.pop %v1483
        %v1485 = vmul.f32 %v1435, 1.442695
        %v1486 = vpow.pop %v1485
        %v1487 = vmul.f32 %v1436, 1.442695
        %v1488 = vpow.pop %v1487
        %v1489 = vmul.f32 %v1437, 1.442695
        %v1490 = vpow.pop %v1489
        %v1491 = vmul.f32 %v1438, 1.442695
        %v1492 = vpow.pop %v1491
        %v1493 = vmul.f32 %v1439, 1.442695
        %v1494 = vpow.pop %v1493
        %v1495 = vmul.f32 %v1440, 1.442695
        %v1496 = vpow.pop %v1495
        %v1497 = vmul.f32 %v1441, 1.442695
        %v1498 = vpow.pop %v1497
        %v1499 = vmul.f32 %v1442, 1.442695
        %v1500 = vpow.pop %v1499
        %v1501 = vmul.f32 %v1443, 1.442695
        %v1502 = vpow.pop %v1501
        %v1503 = vmul.f32 %v1444, 1.442695
        %v1504 = vpow.pop %v1503
        %v1505 = vmul.f32 %v1445, 1.442695
        %v1506 = vpow.pop %v1505
        %v1507 = vmul.f32 %v1446, 1.442695
        %v1508 = vpow.pop %v1507
        %v1509 = vmul.f32 %v1447, 1.442695
        %v1510 = vpow.pop %v1509
        %v1511 = vmul.f32 %v1448, 1.442695
        %v1512 = vpow.pop %v1511
        %v1513 = vadd.f32 %v1450, 1.0
        %v1514 = vadd.f32 %v1452, 1.0
        %v1515 = vadd.f32 %v1454, 1.0
        %v1516 = vadd.f32 %v1456, 1.0
        %v1517 = vadd.f32 %v1458, 1.0
        %v1518 = vadd.f32 %v1460, 1.0
        %v1519 = vadd.f32 %v1462, 1.0
        %v1520 = vadd.f32 %v1464, 1.0
        %v1521 = vadd.f32 %v1466, 1.0
        %v1522 = vadd.f32 %v1468, 1.0
        %v1523 = vadd.f32 %v1470, 1.0
        %v1524 = vadd.f32 %v1472, 1.0
        %v1525 = vadd.f32 %v1474, 1.0
        %v1526 = vadd.f32 %v1476, 1.0
        %v1527 = vadd.f32 %v1478, 1.0
        %v1528 = vadd.f32 %v1480, 1.0
        %v1529 = vadd.f32 %v1482, 1.0
        %v1530 = vadd.f32 %v1484, 1.0
        %v1531 = vadd.f32 %v1486, 1.0
        %v1532 = vadd.f32 %v1488, 1.0
        %v1533 = vadd.f32 %v1490, 1.0
        %v1534 = vadd.f32 %v1492, 1.0
        %v1535 = vadd.f32 %v1494, 1.0
        %v1536 = vadd.f32 %v1496, 1.0
        %v1537 = vadd.f32 %v1498, 1.0
        %v1538 = vadd.f32 %v1500, 1.0
        %v1539 = vadd.f32 %v1502, 1.0
        %v1540 = vadd.f32 %v1504, 1.0
        %v1541 = vadd.f32 %v1506, 1.0
        %v1542 = vadd.f32 %v1508, 1.0
        %v1543 = vadd.f32 %v1510, 1.0
        %v1544 = vadd.f32 %v1512, 1.0
        %v1545 = vrcp.pop %v1513
        %v1546 = vmul.f32 %v1513, %v1545
        %v1547 = vsub.f32 1.0, %v1546
        %v1548 = vmul.f32 %v1545, %v1547
        %v1549 = vadd.f32 %v1545, %v1548
        %vm1550 = vweird.f32 %v1513
        %vm1551 = vweird.f32 %v1545
        %vm1552 = vmor %vm1550, %vm1551
        %v1553 = vsel %vm1552, %v1545, %v1549
        %v1554 = vand.u32 2147483647, %v1513
        %vm1555 = vcmp.eq.f32.partialorder %v1554, 8.507059e+37
        %v1556 = vand.u32 %v1513, 2147483648
        %v1557 = vor.u32 1.1754944e-38, %v1556
        %v1558 = vsel %vm1555, %v1557, %v1553
        %v1559 = vmul.f32 1.0, %v1558
        %v1560 = vrcp.pop %v1514
        %v1561 = vmul.f32 %v1514, %v1560
        %v1562 = vsub.f32 1.0, %v1561
        %v1563 = vmul.f32 %v1560, %v1562
        %v1564 = vadd.f32 %v1560, %v1563
        %vm1565 = vweird.f32 %v1514
        %vm1566 = vweird.f32 %v1560
        %vm1567 = vmor %vm1565, %vm1566
        %v1568 = vsel %vm1567, %v1560, %v1564
        %v1569 = vand.u32 2147483647, %v1514
        %vm1570 = vcmp.eq.f32.partialorder %v1569, 8.507059e+37
        %v1571 = vand.u32 %v1514, 2147483648
        %v1572 = vor.u32 1.1754944e-38, %v1571
        %v1573 = vsel %vm1570, %v1572, %v1568
        %v1574 = vmul.f32 1.0, %v1573
        %v1575 = vrcp.pop %v1515
        %v1576 = vmul.f32 %v1515, %v1575
        %v1577 = vsub.f32 1.0, %v1576
        %v1578 = vmul.f32 %v1575, %v1577
        %v1579 = vadd.f32 %v1575, %v1578
        %vm1580 = vweird.f32 %v1515
        %vm1581 = vweird.f32 %v1575
        %vm1582 = vmor %vm1580, %vm1581
        %v1583 = vsel %vm1582, %v1575, %v1579
        %v1584 = vand.u32 2147483647, %v1515
        %vm1585 = vcmp.eq.f32.partialorder %v1584, 8.507059e+37
        %v1586 = vand.u32 %v1515, 2147483648
        %v1587 = vor.u32 1.1754944e-38, %v1586
        %v1588 = vsel %vm1585, %v1587, %v1583
        %v1589 = vmul.f32 1.0, %v1588
        %v1590 = vrcp.pop %v1516
        %v1591 = vmul.f32 %v1516, %v1590
        %v1592 = vsub.f32 1.0, %v1591
        %v1593 = vmul.f32 %v1590, %v1592
        %v1594 = vadd.f32 %v1590, %v1593
        %vm1595 = vweird.f32 %v1516
        %vm1596 = vweird.f32 %v1590
        %vm1597 = vmor %vm1595, %vm1596
        %v1598 = vsel %vm1597, %v1590, %v1594
        %v1599 = vand.u32 2147483647, %v1516
        %vm1600 = vcmp.eq.f32.partialorder %v1599, 8.507059e+37
        %v1601 = vand.u32 %v1516, 2147483648
        %v1602 = vor.u32 1.1754944e-38, %v1601
        %v1603 = vsel %vm1600, %v1602, %v1598
        %v1604 = vmul.f32 1.0, %v1603
        %v1605 = vrcp.pop %v1517
        %v1606 = vmul.f32 %v1517, %v1605
        %v1607 = vsub.f32 1.0, %v1606
        %v1608 = vmul.f32 %v1605, %v1607
        %v1609 = vadd.f32 %v1605, %v1608
        %vm1610 = vweird.f32 %v1517
        %vm1611 = vweird.f32 %v1605
        %vm1612 = vmor %vm1610, %vm1611
        %v1613 = vsel %vm1612, %v1605, %v1609
        %v1614 = vand.u32 2147483647, %v1517
        %vm1615 = vcmp.eq.f32.partialorder %v1614, 8.507059e+37
        %v1616 = vand.u32 %v1517, 2147483648
        %v1617 = vor.u32 1.1754944e-38, %v1616
        %v1618 = vsel %vm1615, %v1617, %v1613
        %v1619 = vmul.f32 1.0, %v1618
        %v1620 = vrcp.pop %v1518
        %v1621 = vmul.f32 %v1518, %v1620
        %v1622 = vsub.f32 1.0, %v1621
        %v1623 = vmul.f32 %v1620, %v1622
        %v1624 = vadd.f32 %v1620, %v1623
        %vm1625 = vweird.f32 %v1518
        %vm1626 = vweird.f32 %v1620
        %vm1627 = vmor %vm1625, %vm1626
        %v1628 = vsel %vm1627, %v1620, %v1624
        %v1629 = vand.u32 2147483647, %v1518
        %vm1630 = vcmp.eq.f32.partialorder %v1629, 8.507059e+37
        %v1631 = vand.u32 %v1518, 2147483648
        %v1632 = vor.u32 1.1754944e-38, %v1631
        %v1633 = vsel %vm1630, %v1632, %v1628
        %v1634 = vmul.f32 1.0, %v1633
        %v1635 = vrcp.pop %v1519
        %v1636 = vmul.f32 %v1519, %v1635
        %v1637 = vsub.f32 1.0, %v1636
        %v1638 = vmul.f32 %v1635, %v1637
        %v1639 = vadd.f32 %v1635, %v1638
        %vm1640 = vweird.f32 %v1519
        %vm1641 = vweird.f32 %v1635
        %vm1642 = vmor %vm1640, %vm1641
        %v1643 = vsel %vm1642, %v1635, %v1639
        %v1644 = vand.u32 2147483647, %v1519
        %vm1645 = vcmp.eq.f32.partialorder %v1644, 8.507059e+37
        %v1646 = vand.u32 %v1519, 2147483648
        %v1647 = vor.u32 1.1754944e-38, %v1646
        %v1648 = vsel %vm1645, %v1647, %v1643
        %v1649 = vmul.f32 1.0, %v1648
        %v1650 = vrcp.pop %v1520
        %v1651 = vmul.f32 %v1520, %v1650
        %v1652 = vsub.f32 1.0, %v1651
        %v1653 = vmul.f32 %v1650, %v1652
        %v1654 = vadd.f32 %v1650, %v1653
        %vm1655 = vweird.f32 %v1520
        %vm1656 = vweird.f32 %v1650
        %vm1657 = vmor %vm1655, %vm1656
        %v1658 = vsel %vm1657, %v1650, %v1654
        %v1659 = vand.u32 2147483647, %v1520
        %vm1660 = vcmp.eq.f32.partialorder %v1659, 8.507059e+37
        %v1661 = vand.u32 %v1520, 2147483648
        %v1662 = vor.u32 1.1754944e-38, %v1661
        %v1663 = vsel %vm1660, %v1662, %v1658
        %v1664 = vmul.f32 1.0, %v1663
        %v1665 = vrcp.pop %v1521
        %v1666 = vmul.f32 %v1521, %v1665
        %v1667 = vsub.f32 1.0, %v1666
        %v1668 = vmul.f32 %v1665, %v1667
        %v1669 = vadd.f32 %v1665, %v1668
        %vm1670 = vweird.f32 %v1521
        %vm1671 = vweird.f32 %v1665
        %vm1672 = vmor %vm1670, %vm1671
        %v1673 = vsel %vm1672, %v1665, %v1669
        %v1674 = vand.u32 2147483647, %v1521
        %vm1675 = vcmp.eq.f32.partialorder %v1674, 8.507059e+37
        %v1676 = vand.u32 %v1521, 2147483648
        %v1677 = vor.u32 1.1754944e-38, %v1676
        %v1678 = vsel %vm1675, %v1677, %v1673
        %v1679 = vmul.f32 1.0, %v1678
        %v1680 = vrcp.pop %v1522
        %v1681 = vmul.f32 %v1522, %v1680
        %v1682 = vsub.f32 1.0, %v1681
        %v1683 = vmul.f32 %v1680, %v1682
        %v1684 = vadd.f32 %v1680, %v1683
        %vm1685 = vweird.f32 %v1522
        %vm1686 = vweird.f32 %v1680
        %vm1687 = vmor %vm1685, %vm1686
        %v1688 = vsel %vm1687, %v1680, %v1684
        %v1689 = vand.u32 2147483647, %v1522
        %vm1690 = vcmp.eq.f32.partialorder %v1689, 8.507059e+37
        %v1691 = vand.u32 %v1522, 2147483648
        %v1692 = vor.u32 1.1754944e-38, %v1691
        %v1693 = vsel %vm1690, %v1692, %v1688
        %v1694 = vmul.f32 1.0, %v1693
        %v1695 = vrcp.pop %v1523
        %v1696 = vmul.f32 %v1523, %v1695
        %v1697 = vsub.f32 1.0, %v1696
        %v1698 = vmul.f32 %v1695, %v1697
        %v1699 = vadd.f32 %v1695, %v1698
        %vm1700 = vweird.f32 %v1523
        %vm1701 = vweird.f32 %v1695
        %vm1702 = vmor %vm1700, %vm1701
        %v1703 = vsel %vm1702, %v1695, %v1699
        %v1704 = vand.u32 2147483647, %v1523
        %vm1705 = vcmp.eq.f32.partialorder %v1704, 8.507059e+37
        %v1706 = vand.u32 %v1523, 2147483648
        %v1707 = vor.u32 1.1754944e-38, %v1706
        %v1708 = vsel %vm1705, %v1707, %v1703
        %v1709 = vmul.f32 1.0, %v1708
        %v1710 = vrcp.pop %v1524
        %v1711 = vmul.f32 %v1524, %v1710
        %v1712 = vsub.f32 1.0, %v1711
        %v1713 = vmul.f32 %v1710, %v1712
        %v1714 = vadd.f32 %v1710, %v1713
        %vm1715 = vweird.f32 %v1524
        %vm1716 = vweird.f32 %v1710
        %vm1717 = vmor %vm1715, %vm1716
        %v1718 = vsel %vm1717, %v1710, %v1714
        %v1719 = vand.u32 2147483647, %v1524
        %vm1720 = vcmp.eq.f32.partialorder %v1719, 8.507059e+37
        %v1721 = vand.u32 %v1524, 2147483648
        %v1722 = vor.u32 1.1754944e-38, %v1721
        %v1723 = vsel %vm1720, %v1722, %v1718
        %v1724 = vmul.f32 1.0, %v1723
        %v1725 = vrcp.pop %v1525
        %v1726 = vmul.f32 %v1525, %v1725
        %v1727 = vsub.f32 1.0, %v1726
        %v1728 = vmul.f32 %v1725, %v1727
        %v1729 = vadd.f32 %v1725, %v1728
        %vm1730 = vweird.f32 %v1525
        %vm1731 = vweird.f32 %v1725
        %vm1732 = vmor %vm1730, %vm1731
        %v1733 = vsel %vm1732, %v1725, %v1729
        %v1734 = vand.u32 2147483647, %v1525
        %vm1735 = vcmp.eq.f32.partialorder %v1734, 8.507059e+37
        %v1736 = vand.u32 %v1525, 2147483648
        %v1737 = vor.u32 1.1754944e-38, %v1736
        %v1738 = vsel %vm1735, %v1737, %v1733
        %v1739 = vmul.f32 1.0, %v1738
        %v1740 = vrcp.pop %v1526
        %v1741 = vmul.f32 %v1526, %v1740
        %v1742 = vsub.f32 1.0, %v1741
        %v1743 = vmul.f32 %v1740, %v1742
        %v1744 = vadd.f32 %v1740, %v1743
        %vm1745 = vweird.f32 %v1526
        %vm1746 = vweird.f32 %v1740
        %vm1747 = vmor %vm1745, %vm1746
        %v1748 = vsel %vm1747, %v1740, %v1744
        %v1749 = vand.u32 2147483647, %v1526
        %vm1750 = vcmp.eq.f32.partialorder %v1749, 8.507059e+37
        %v1751 = vand.u32 %v1526, 2147483648
        %v1752 = vor.u32 1.1754944e-38, %v1751
        %v1753 = vsel %vm1750, %v1752, %v1748
        %v1754 = vmul.f32 1.0, %v1753
        %v1755 = vrcp.pop %v1527
        %v1756 = vmul.f32 %v1527, %v1755
        %v1757 = vsub.f32 1.0, %v1756
        %v1758 = vmul.f32 %v1755, %v1757
        %v1759 = vadd.f32 %v1755, %v1758
        %vm1760 = vweird.f32 %v1527
        %vm1761 = vweird.f32 %v1755
        %vm1762 = vmor %vm1760, %vm1761
        %v1763 = vsel %vm1762, %v1755, %v1759
        %v1764 = vand.u32 2147483647, %v1527
        %vm1765 = vcmp.eq.f32.partialorder %v1764, 8.507059e+37
        %v1766 = vand.u32 %v1527, 2147483648
        %v1767 = vor.u32 1.1754944e-38, %v1766
        %v1768 = vsel %vm1765, %v1767, %v1763
        %v1769 = vmul.f32 1.0, %v1768
        %v1770 = vrcp.pop %v1528
        %v1771 = vmul.f32 %v1528, %v1770
        %v1772 = vsub.f32 1.0, %v1771
        %v1773 = vmul.f32 %v1770, %v1772
        %v1774 = vadd.f32 %v1770, %v1773
        %vm1775 = vweird.f32 %v1528
        %vm1776 = vweird.f32 %v1770
        %vm1777 = vmor %vm1775, %vm1776
        %v1778 = vsel %vm1777, %v1770, %v1774
        %v1779 = vand.u32 2147483647, %v1528
        %vm1780 = vcmp.eq.f32.partialorder %v1779, 8.507059e+37
        %v1781 = vand.u32 %v1528, 2147483648
        %v1782 = vor.u32 1.1754944e-38, %v1781
        %v1783 = vsel %vm1780, %v1782, %v1778
        %v1784 = vmul.f32 1.0, %v1783
        %v1785 = vrcp.pop %v1529
        %v1786 = vmul.f32 %v1529, %v1785
        %v1787 = vsub.f32 1.0, %v1786
        %v1788 = vmul.f32 %v1785, %v1787
        %v1789 = vadd.f32 %v1785, %v1788
        %vm1790 = vweird.f32 %v1529
        %vm1791 = vweird.f32 %v1785
        %vm1792 = vmor %vm1790, %vm1791
        %v1793 = vsel %vm1792, %v1785, %v1789
        %v1794 = vand.u32 2147483647, %v1529
        %vm1795 = vcmp.eq.f32.partialorder %v1794, 8.507059e+37
        %v1796 = vand.u32 %v1529, 2147483648
        %v1797 = vor.u32 1.1754944e-38, %v1796
        %v1798 = vsel %vm1795, %v1797, %v1793
        %v1799 = vmul.f32 1.0, %v1798
        %v1800 = vrcp.pop %v1530
        %v1801 = vmul.f32 %v1530, %v1800
        %v1802 = vsub.f32 1.0, %v1801
        %v1803 = vmul.f32 %v1800, %v1802
        %v1804 = vadd.f32 %v1800, %v1803
        %vm1805 = vweird.f32 %v1530
        %vm1806 = vweird.f32 %v1800
        %vm1807 = vmor %vm1805, %vm1806
        %v1808 = vsel %vm1807, %v1800, %v1804
        %v1809 = vand.u32 2147483647, %v1530
        %vm1810 = vcmp.eq.f32.partialorder %v1809, 8.507059e+37
        %v1811 = vand.u32 %v1530, 2147483648
        %v1812 = vor.u32 1.1754944e-38, %v1811
        %v1813 = vsel %vm1810, %v1812, %v1808
        %v1814 = vmul.f32 1.0, %v1813
        %v1815 = vrcp.pop %v1531
        %v1816 = vmul.f32 %v1531, %v1815
        %v1817 = vsub.f32 1.0, %v1816
        %v1818 = vmul.f32 %v1815, %v1817
        %v1819 = vadd.f32 %v1815, %v1818
        %vm1820 = vweird.f32 %v1531
        %vm1821 = vweird.f32 %v1815
        %vm1822 = vmor %vm1820, %vm1821
        %v1823 = vsel %vm1822, %v1815, %v1819
        %v1824 = vand.u32 2147483647, %v1531
        %vm1825 = vcmp.eq.f32.partialorder %v1824, 8.507059e+37
        %v1826 = vand.u32 %v1531, 2147483648
        %v1827 = vor.u32 1.1754944e-38, %v1826
        %v1828 = vsel %vm1825, %v1827, %v1823
        %v1829 = vmul.f32 1.0, %v1828
        %v1830 = vrcp.pop %v1532
        %v1831 = vmul.f32 %v1532, %v1830
        %v1832 = vsub.f32 1.0, %v1831
        %v1833 = vmul.f32 %v1830, %v1832
        %v1834 = vadd.f32 %v1830, %v1833
        %vm1835 = vweird.f32 %v1532
        %vm1836 = vweird.f32 %v1830
        %vm1837 = vmor %vm1835, %vm1836
        %v1838 = vsel %vm1837, %v1830, %v1834
        %v1839 = vand.u32 2147483647, %v1532
        %vm1840 = vcmp.eq.f32.partialorder %v1839, 8.507059e+37
        %v1841 = vand.u32 %v1532, 2147483648
        %v1842 = vor.u32 1.1754944e-38, %v1841
        %v1843 = vsel %vm1840, %v1842, %v1838
        %v1844 = vmul.f32 1.0, %v1843
        %v1845 = vrcp.pop %v1533
        %v1846 = vmul.f32 %v1533, %v1845
        %v1847 = vsub.f32 1.0, %v1846
        %v1848 = vmul.f32 %v1845, %v1847
        %v1849 = vadd.f32 %v1845, %v1848
        %vm1850 = vweird.f32 %v1533
        %vm1851 = vweird.f32 %v1845
        %vm1852 = vmor %vm1850, %vm1851
        %v1853 = vsel %vm1852, %v1845, %v1849
        %v1854 = vand.u32 2147483647, %v1533
        %vm1855 = vcmp.eq.f32.partialorder %v1854, 8.507059e+37
        %v1856 = vand.u32 %v1533, 2147483648
        %v1857 = vor.u32 1.1754944e-38, %v1856
        %v1858 = vsel %vm1855, %v1857, %v1853
        %v1859 = vmul.f32 1.0, %v1858
        %v1860 = vrcp.pop %v1534
        %v1861 = vmul.f32 %v1534, %v1860
        %v1862 = vsub.f32 1.0, %v1861
        %v1863 = vmul.f32 %v1860, %v1862
        %v1864 = vadd.f32 %v1860, %v1863
        %vm1865 = vweird.f32 %v1534
        %vm1866 = vweird.f32 %v1860
        %vm1867 = vmor %vm1865, %vm1866
        %v1868 = vsel %vm1867, %v1860, %v1864
        %v1869 = vand.u32 2147483647, %v1534
        %vm1870 = vcmp.eq.f32.partialorder %v1869, 8.507059e+37
        %v1871 = vand.u32 %v1534, 2147483648
        %v1872 = vor.u32 1.1754944e-38, %v1871
        %v1873 = vsel %vm1870, %v1872, %v1868
        %v1874 = vmul.f32 1.0, %v1873
        %v1875 = vrcp.pop %v1535
        %v1876 = vmul.f32 %v1535, %v1875
        %v1877 = vsub.f32 1.0, %v1876
        %v1878 = vmul.f32 %v1875, %v1877
        %v1879 = vadd.f32 %v1875, %v1878
        %vm1880 = vweird.f32 %v1535
        %vm1881 = vweird.f32 %v1875
        %vm1882 = vmor %vm1880, %vm1881
        %v1883 = vsel %vm1882, %v1875, %v1879
        %v1884 = vand.u32 2147483647, %v1535
        %vm1885 = vcmp.eq.f32.partialorder %v1884, 8.507059e+37
        %v1886 = vand.u32 %v1535, 2147483648
        %v1887 = vor.u32 1.1754944e-38, %v1886
        %v1888 = vsel %vm1885, %v1887, %v1883
        %v1889 = vmul.f32 1.0, %v1888
        %v1890 = vrcp.pop %v1536
        %v1891 = vmul.f32 %v1536, %v1890
        %v1892 = vsub.f32 1.0, %v1891
        %v1893 = vmul.f32 %v1890, %v1892
        %v1894 = vadd.f32 %v1890, %v1893
        %vm1895 = vweird.f32 %v1536
        %vm1896 = vweird.f32 %v1890
        %vm1897 = vmor %vm1895, %vm1896
        %v1898 = vsel %vm1897, %v1890, %v1894
        %v1899 = vand.u32 2147483647, %v1536
        %vm1900 = vcmp.eq.f32.partialorder %v1899, 8.507059e+37
        %v1901 = vand.u32 %v1536, 2147483648
        %v1902 = vor.u32 1.1754944e-38, %v1901
        %v1903 = vsel %vm1900, %v1902, %v1898
        %v1904 = vmul.f32 1.0, %v1903
        %v1905 = vrcp.pop %v1537
        %v1906 = vmul.f32 %v1537, %v1905
        %v1907 = vsub.f32 1.0, %v1906
        %v1908 = vmul.f32 %v1905, %v1907
        %v1909 = vadd.f32 %v1905, %v1908
        %vm1910 = vweird.f32 %v1537
        %vm1911 = vweird.f32 %v1905
        %vm1912 = vmor %vm1910, %vm1911
        %v1913 = vsel %vm1912, %v1905, %v1909
        %v1914 = vand.u32 2147483647, %v1537
        %vm1915 = vcmp.eq.f32.partialorder %v1914, 8.507059e+37
        %v1916 = vand.u32 %v1537, 2147483648
        %v1917 = vor.u32 1.1754944e-38, %v1916
        %v1918 = vsel %vm1915, %v1917, %v1913
        %v1919 = vmul.f32 1.0, %v1918
        %v1920 = vrcp.pop %v1538
        %v1921 = vmul.f32 %v1538, %v1920
        %v1922 = vsub.f32 1.0, %v1921
        %v1923 = vmul.f32 %v1920, %v1922
        %v1924 = vadd.f32 %v1920, %v1923
        %vm1925 = vweird.f32 %v1538
        %vm1926 = vweird.f32 %v1920
        %vm1927 = vmor %vm1925, %vm1926
        %v1928 = vsel %vm1927, %v1920, %v1924
        %v1929 = vand.u32 2147483647, %v1538
        %vm1930 = vcmp.eq.f32.partialorder %v1929, 8.507059e+37
        %v1931 = vand.u32 %v1538, 2147483648
        %v1932 = vor.u32 1.1754944e-38, %v1931
        %v1933 = vsel %vm1930, %v1932, %v1928
        %v1934 = vmul.f32 1.0, %v1933
        %v1935 = vrcp.pop %v1539
        %v1936 = vmul.f32 %v1539, %v1935
        %v1937 = vsub.f32 1.0, %v1936
        %v1938 = vmul.f32 %v1935, %v1937
        %v1939 = vadd.f32 %v1935, %v1938
        %vm1940 = vweird.f32 %v1539
        %vm1941 = vweird.f32 %v1935
        %vm1942 = vmor %vm1940, %vm1941
        %v1943 = vsel %vm1942, %v1935, %v1939
        %v1944 = vand.u32 2147483647, %v1539
        %vm1945 = vcmp.eq.f32.partialorder %v1944, 8.507059e+37
        %v1946 = vand.u32 %v1539, 2147483648
        %v1947 = vor.u32 1.1754944e-38, %v1946
        %v1948 = vsel %vm1945, %v1947, %v1943
        %v1949 = vmul.f32 1.0, %v1948
        %v1950 = vrcp.pop %v1540
        %v1951 = vmul.f32 %v1540, %v1950
        %v1952 = vsub.f32 1.0, %v1951
        %v1953 = vmul.f32 %v1950, %v1952
        %v1954 = vadd.f32 %v1950, %v1953
        %vm1955 = vweird.f32 %v1540
        %vm1956 = vweird.f32 %v1950
        %vm1957 = vmor %vm1955, %vm1956
        %v1958 = vsel %vm1957, %v1950, %v1954
        %v1959 = vand.u32 2147483647, %v1540
        %vm1960 = vcmp.eq.f32.partialorder %v1959, 8.507059e+37
        %v1961 = vand.u32 %v1540, 2147483648
        %v1962 = vor.u32 1.1754944e-38, %v1961
        %v1963 = vsel %vm1960, %v1962, %v1958
        %v1964 = vmul.f32 1.0, %v1963
        %v1965 = vrcp.pop %v1541
        %v1966 = vmul.f32 %v1541, %v1965
        %v1967 = vsub.f32 1.0, %v1966
        %v1968 = vmul.f32 %v1965, %v1967
        %v1969 = vadd.f32 %v1965, %v1968
        %vm1970 = vweird.f32 %v1541
        %vm1971 = vweird.f32 %v1965
        %vm1972 = vmor %vm1970, %vm1971
        %v1973 = vsel %vm1972, %v1965, %v1969
        %v1974 = vand.u32 2147483647, %v1541
        %vm1975 = vcmp.eq.f32.partialorder %v1974, 8.507059e+37
        %v1976 = vand.u32 %v1541, 2147483648
        %v1977 = vor.u32 1.1754944e-38, %v1976
        %v1978 = vsel %vm1975, %v1977, %v1973
        %v1979 = vmul.f32 1.0, %v1978
        %v1980 = vrcp.pop %v1542
        %v1981 = vmul.f32 %v1542, %v1980
        %v1982 = vsub.f32 1.0, %v1981
        %v1983 = vmul.f32 %v1980, %v1982
        %v1984 = vadd.f32 %v1980, %v1983
        %vm1985 = vweird.f32 %v1542
        %vm1986 = vweird.f32 %v1980
        %vm1987 = vmor %vm1985, %vm1986
        %v1988 = vsel %vm1987, %v1980, %v1984
        %v1989 = vand.u32 2147483647, %v1542
        %vm1990 = vcmp.eq.f32.partialorder %v1989, 8.507059e+37
        %v1991 = vand.u32 %v1542, 2147483648
        %v1992 = vor.u32 1.1754944e-38, %v1991
        %v1993 = vsel %vm1990, %v1992, %v1988
        %v1994 = vmul.f32 1.0, %v1993
        %v1995 = vrcp.pop %v1543
        %v1996 = vmul.f32 %v1543, %v1995
        %v1997 = vsub.f32 1.0, %v1996
        %v1998 = vmul.f32 %v1995, %v1997
        %v1999 = vadd.f32 %v1995, %v1998
        %vm2000 = vweird.f32 %v1543
        %vm2001 = vweird.f32 %v1995
        %vm2002 = vmor %vm2000, %vm2001
        %v2003 = vsel %vm2002, %v1995, %v1999
        %v2004 = vand.u32 2147483647, %v1543
        %vm2005 = vcmp.eq.f32.partialorder %v2004, 8.507059e+37
        %v2006 = vand.u32 %v1543, 2147483648
        %v2007 = vor.u32 1.1754944e-38, %v2006
        %v2008 = vsel %vm2005, %v2007, %v2003
        %v2009 = vmul.f32 1.0, %v2008
        %v2010 = vrcp.pop %v1544
        %v2011 = vmul.f32 %v1544, %v2010
        %v2012 = vsub.f32 1.0, %v2011
        %v2013 = vmul.f32 %v2010, %v2012
        %v2014 = vadd.f32 %v2010, %v2013
        %vm2015 = vweird.f32 %v1544
        %vm2016 = vweird.f32 %v2010
        %vm2017 = vmor %vm2015, %vm2016
        %v2018 = vsel %vm2017, %v2010, %v2014
        %v2019 = vand.u32 2147483647, %v1544
        %vm2020 = vcmp.eq.f32.partialorder %v2019, 8.507059e+37
        %v2021 = vand.u32 %v1544, 2147483648
        %v2022 = vor.u32 1.1754944e-38, %v2021
        %v2023 = vsel %vm2020, %v2022, %v2018
        %v2024 = vmul.f32 1.0, %v2023
        %v2025 = vpack.c.bf16 %v1574, %v1559
        %v2026 = vpack.c.bf16 %v1604, %v1589
        %v2027 = vpack.c.bf16 %v1634, %v1619
        %v2028 = vpack.c.bf16 %v1664, %v1649
        %v2029 = vpack.c.bf16 %v1694, %v1679
        %v2030 = vpack.c.bf16 %v1724, %v1709
        %v2031 = vpack.c.bf16 %v1754, %v1739
        %v2032 = vpack.c.bf16 %v1784, %v1769
        %v2033 = vpack.c.bf16 %v1814, %v1799
        %v2034 = vpack.c.bf16 %v1844, %v1829
        %v2035 = vpack.c.bf16 %v1874, %v1859
        %v2036 = vpack.c.bf16 %v1904, %v1889
        %v2037 = vpack.c.bf16 %v1934, %v1919
        %v2038 = vpack.c.bf16 %v1964, %v1949
        %v2039 = vpack.c.bf16 %v1994, %v1979
        %v2040 = vpack.c.bf16 %v2024, %v2009
        %v2041 = vld [vmem:[#allocation8] sm:$0xf]
        %v2042 = vld [vmem:[#allocation8 + $0x4] sm:$0xf]
        %v2043 = vld [vmem:[#allocation8 + $0x8] sm:$0xf]
        %v2044 = vld [vmem:[#allocation8 + $0xc] sm:$0xf]
        %v2045 = vld [vmem:[#allocation8 + $0x10] sm:$0xf]
        %v2046 = vld [vmem:[#allocation8 + $0x14] sm:$0xf]
        %v2047 = vld [vmem:[#allocation8 + $0x18] sm:$0xf]
        %v2048 = vld [vmem:[#allocation8 + $0x1c] sm:$0xf]
        %v2049 = vld [vmem:[#allocation8 + $0x20] sm:$0xf]
        %v2050 = vld [vmem:[#allocation8 + $0x24] sm:$0xf]
        %v2051 = vld [vmem:[#allocation8 + $0x28] sm:$0xf]
        %v2052 = vld [vmem:[#allocation8 + $0x2c] sm:$0xf]
        %v2053 = vld [vmem:[#allocation8 + $0x30] sm:$0xf]
        %v2054 = vld [vmem:[#allocation8 + $0x34] sm:$0xf]
        %v2055 = vld [vmem:[#allocation8 + $0x38] sm:$0xf]
        %v2056 = vld [vmem:[#allocation8 + $0x3c] sm:$0xf]
        %v2057 = vld [vmem:[%s6] sm:$0x1]
        %v2059 = vperm.slane %v2057, 0
        %v2077 = vunpack.c.l.b16 %v2041
        %v2078 = vunpack.c.l.b16 %v2042
        %v2079 = vunpack.c.l.b16 %v2043
        %v2080 = vunpack.c.l.b16 %v2044
        %v2081 = vunpack.c.l.b16 %v2045
        %v2082 = vunpack.c.l.b16 %v2046
        %v2083 = vunpack.c.l.b16 %v2047
        %v2084 = vunpack.c.l.b16 %v2048
        %v2085 = vunpack.c.l.b16 %v2049
        %v2086 = vunpack.c.l.b16 %v2050
        %v2087 = vunpack.c.l.b16 %v2051
        %v2088 = vunpack.c.l.b16 %v2052
        %v2089 = vunpack.c.l.b16 %v2053
        %v2090 = vunpack.c.l.b16 %v2054
        %v2091 = vunpack.c.l.b16 %v2055
        %v2092 = vunpack.c.l.b16 %v2056
        %v2093 = vpack.c.b16 %v2078, %v2077
        %v2094 = vpack.c.b16 %v2080, %v2079
        %v2095 = vpack.c.b16 %v2082, %v2081
        %v2096 = vpack.c.b16 %v2084, %v2083
        %v2097 = vpack.c.b16 %v2086, %v2085
        %v2098 = vpack.c.b16 %v2088, %v2087
        %v2099 = vpack.c.b16 %v2090, %v2089
        %v2100 = vpack.c.b16 %v2092, %v2091
        %2109 = vmatpush.bf16.msra.mxu0 %v2100
        %2110 = vmatpush.bf16.msra.mxu0 %v2099
        %2111 = vmatpush.bf16.msra.mxu0 %v2098
        %2112 = vmatpush.bf16.msra.mxu0 %v2097
        %2113 = vmatpush.bf16.msra.mxu0 %v2096
        %2114 = vmatpush.bf16.msra.mxu0 %v2095
        %2115 = vmatpush.bf16.msra.mxu0 %v2094
        %2116 = vmatpush.bf16.msra.mxu0 %v2093
        %2117 = vmatmul.bf16.gmra.mxu0 %v2025
        %v2118 = vpop.f32.mrf.mxu0
        %v2119 = vadd.f32 %v2059, %v2118
        %v2120 = vpop.f32.mrf.mxu0
        %v2121 = vadd.f32 %v2059, %v2120
        %2122 = vmatmul.bf16.gmra.mxu0 %v2026
        %v2123 = vpop.f32.mrf.mxu0
        %v2124 = vadd.f32 %v2059, %v2123
        %v2125 = vpop.f32.mrf.mxu0
        %v2126 = vadd.f32 %v2059, %v2125
        %2127 = vmatmul.bf16.gmra.mxu0 %v2027
        %v2128 = vpop.f32.mrf.mxu0
        %v2129 = vadd.f32 %v2059, %v2128
        %v2130 = vpop.f32.mrf.mxu0
        %v2131 = vadd.f32 %v2059, %v2130
        %2132 = vmatmul.bf16.gmra.mxu0 %v2028
        %v2133 = vpop.f32.mrf.mxu0
        %v2134 = vadd.f32 %v2059, %v2133
        %v2135 = vpop.f32.mrf.mxu0
        %v2136 = vadd.f32 %v2059, %v2135
        %2137 = vmatmul.bf16.gmra.mxu0 %v2029
        %v2138 = vpop.f32.mrf.mxu0
        %v2139 = vadd.f32 %v2059, %v2138
        %v2140 = vpop.f32.mrf.mxu0
        %v2141 = vadd.f32 %v2059, %v2140
        %2142 = vmatmul.bf16.gmra.mxu0 %v2030
        %v2143 = vpop.f32.mrf.mxu0
        %v2144 = vadd.f32 %v2059, %v2143
        %v2145 = vpop.f32.mrf.mxu0
        %v2146 = vadd.f32 %v2059, %v2145
        %2147 = vmatmul.bf16.gmra.mxu0 %v2031
        %v2148 = vpop.f32.mrf.mxu0
        %v2149 = vadd.f32 %v2059, %v2148
        %v2150 = vpop.f32.mrf.mxu0
        %v2151 = vadd.f32 %v2059, %v2150
        %2152 = vmatmul.bf16.gmra.mxu0 %v2032
        %v2153 = vpop.f32.mrf.mxu0
        %v2154 = vadd.f32 %v2059, %v2153
        %v2155 = vpop.f32.mrf.mxu0
        %v2156 = vadd.f32 %v2059, %v2155
        %2157 = vmatmul.bf16.gmra.mxu0 %v2033
        %v2158 = vpop.f32.mrf.mxu0
        %v2159 = vadd.f32 %v2059, %v2158
        %v2160 = vpop.f32.mrf.mxu0
        %v2161 = vadd.f32 %v2059, %v2160
        %2162 = vmatmul.bf16.gmra.mxu0 %v2034
        %v2163 = vpop.f32.mrf.mxu0
        %v2164 = vadd.f32 %v2059, %v2163
        %v2165 = vpop.f32.mrf.mxu0
        %v2166 = vadd.f32 %v2059, %v2165
        %2167 = vmatmul.bf16.gmra.mxu0 %v2035
        %v2168 = vpop.f32.mrf.mxu0
        %v2169 = vadd.f32 %v2059, %v2168
        %v2170 = vpop.f32.mrf.mxu0
        %v2171 = vadd.f32 %v2059, %v2170
        %2172 = vmatmul.bf16.gmra.mxu0 %v2036
        %v2173 = vpop.f32.mrf.mxu0
        %v2174 = vadd.f32 %v2059, %v2173
        %v2175 = vpop.f32.mrf.mxu0
        %v2176 = vadd.f32 %v2059, %v2175
        %2177 = vmatmul.bf16.gmra.mxu0 %v2037
        %v2178 = vpop.f32.mrf.mxu0
        %v2179 = vadd.f32 %v2059, %v2178
        %v2180 = vpop.f32.mrf.mxu0
        %v2181 = vadd.f32 %v2059, %v2180
        %2182 = vmatmul.bf16.gmra.mxu0 %v2038
        %v2183 = vpop.f32.mrf.mxu0
        %v2184 = vadd.f32 %v2059, %v2183
        %v2185 = vpop.f32.mrf.mxu0
        %v2186 = vadd.f32 %v2059, %v2185
        %2187 = vmatmul.bf16.gmra.mxu0 %v2039
        %v2188 = vpop.f32.mrf.mxu0
        %v2189 = vadd.f32 %v2059, %v2188
        %v2190 = vpop.f32.mrf.mxu0
        %v2191 = vadd.f32 %v2059, %v2190
        %2192 = vmatmul.bf16.gmra.mxu0 %v2040
        %v2193 = vpop.f32.mrf.mxu0
        %v2194 = vadd.f32 %v2059, %v2193
        %v2195 = vpop.f32.mrf.mxu0
        %v2196 = vadd.f32 %v2059, %v2195
        %2197 = vdwg.mxu0
        %v2198 = vxor.u32 %v2119, 2147483648
        %v2199 = vxor.u32 %v2121, 2147483648
        %v2200 = vxor.u32 %v2124, 2147483648
        %v2201 = vxor.u32 %v2126, 2147483648
        %v2202 = vxor.u32 %v2129, 2147483648
        %v2203 = vxor.u32 %v2131, 2147483648
        %v2204 = vxor.u32 %v2134, 2147483648
        %v2205 = vxor.u32 %v2136, 2147483648
        %v2206 = vxor.u32 %v2139, 2147483648
        %v2207 = vxor.u32 %v2141, 2147483648
        %v2208 = vxor.u32 %v2144, 2147483648
        %v2209 = vxor.u32 %v2146, 2147483648
        %v2210 = vxor.u32 %v2149, 2147483648
        %v2211 = vxor.u32 %v2151, 2147483648
        %v2212 = vxor.u32 %v2154, 2147483648
        %v2213 = vxor.u32 %v2156, 2147483648
        %v2214 = vxor.u32 %v2159, 2147483648
        %v2215 = vxor.u32 %v2161, 2147483648
        %v2216 = vxor.u32 %v2164, 2147483648
        %v2217 = vxor.u32 %v2166, 2147483648
        %v2218 = vxor.u32 %v2169, 2147483648
        %v2219 = vxor.u32 %v2171, 2147483648
        %v2220 = vxor.u32 %v2174, 2147483648
        %v2221 = vxor.u32 %v2176, 2147483648
        %v2222 = vxor.u32 %v2179, 2147483648
        %v2223 = vxor.u32 %v2181, 2147483648
        %v2224 = vxor.u32 %v2184, 2147483648
        %v2225 = vxor.u32 %v2186, 2147483648
        %v2226 = vxor.u32 %v2189, 2147483648
        %v2227 = vxor.u32 %v2191, 2147483648
        %v2228 = vxor.u32 %v2194, 2147483648
        %v2229 = vxor.u32 %v2196, 2147483648
        %v2230 = vmul.f32 %v2198, 1.442695
        %v2231 = vpow.pop %v2230
        %v2232 = vmul.f32 %v2199, 1.442695
        %v2233 = vpow.pop %v2232
        %v2234 = vmul.f32 %v2200, 1.442695
        %v2235 = vpow.pop %v2234
        %v2236 = vmul.f32 %v2201, 1.442695
        %v2237 = vpow.pop %v2236
        %v2238 = vmul.f32 %v2202, 1.442695
        %v2239 = vpow.pop %v2238
        %v2240 = vmul.f32 %v2203, 1.442695
        %v2241 = vpow.pop %v2240
        %v2242 = vmul.f32 %v2204, 1.442695
        %v2243 = vpow.pop %v2242
        %v2244 = vmul.f32 %v2205, 1.442695
        %v2245 = vpow.pop %v2244
        %v2246 = vmul.f32 %v2206, 1.442695
        %v2247 = vpow.pop %v2246
        %v2248 = vmul.f32 %v2207, 1.442695
        %v2249 = vpow.pop %v2248
        %v2250 = vmul.f32 %v2208, 1.442695
        %v2251 = vpow.pop %v2250
        %v2252 = vmul.f32 %v2209, 1.442695
        %v2253 = vpow.pop %v2252
        %v2254 = vmul.f32 %v2210, 1.442695
        %v2255 = vpow.pop %v2254
        %v2256 = vmul.f32 %v2211, 1.442695
        %v2257 = vpow.pop %v2256
        %v2258 = vmul.f32 %v2212, 1.442695
        %v2259 = vpow.pop %v2258
        %v2260 = vmul.f32 %v2213, 1.442695
        %v2261 = vpow.pop %v2260
        %v2262 = vmul.f32 %v2214, 1.442695
        %v2263 = vpow.pop %v2262
        %v2264 = vmul.f32 %v2215, 1.442695
        %v2265 = vpow.pop %v2264
        %v2266 = vmul.f32 %v2216, 1.442695
        %v2267 = vpow.pop %v2266
        %v2268 = vmul.f32 %v2217, 1.442695
        %v2269 = vpow.pop %v2268
        %v2270 = vmul.f32 %v2218, 1.442695
        %v2271 = vpow.pop %v2270
        %v2272 = vmul.f32 %v2219, 1.442695
        %v2273 = vpow.pop %v2272
        %v2274 = vmul.f32 %v2220, 1.442695
        %v2275 = vpow.pop %v2274
        %v2276 = vmul.f32 %v2221, 1.442695
        %v2277 = vpow.pop %v2276
        %v2278 = vmul.f32 %v2222, 1.442695
        %v2279 = vpow.pop %v2278
        %v2280 = vmul.f32 %v2223, 1.442695
        %v2281 = vpow.pop %v2280
        %v2282 = vmul.f32 %v2224, 1.442695
        %v2283 = vpow.pop %v2282
        %v2284 = vmul.f32 %v2225, 1.442695
        %v2285 = vpow.pop %v2284
        %v2286 = vmul.f32 %v2226, 1.442695
        %v2287 = vpow.pop %v2286
        %v2288 = vmul.f32 %v2227, 1.442695
        %v2289 = vpow.pop %v2288
        %v2290 = vmul.f32 %v2228, 1.442695
        %v2291 = vpow.pop %v2290
        %v2292 = vmul.f32 %v2229, 1.442695
        %v2293 = vpow.pop %v2292
        %v2294 = vadd.f32 %v2231, 1.0
        %v2295 = vadd.f32 %v2233, 1.0
        %v2296 = vadd.f32 %v2235, 1.0
        %v2297 = vadd.f32 %v2237, 1.0
        %v2298 = vadd.f32 %v2239, 1.0
        %v2299 = vadd.f32 %v2241, 1.0
        %v2300 = vadd.f32 %v2243, 1.0
        %v2301 = vadd.f32 %v2245, 1.0
        %v2302 = vadd.f32 %v2247, 1.0
        %v2303 = vadd.f32 %v2249, 1.0
        %v2304 = vadd.f32 %v2251, 1.0
        %v2305 = vadd.f32 %v2253, 1.0
        %v2306 = vadd.f32 %v2255, 1.0
        %v2307 = vadd.f32 %v2257, 1.0
        %v2308 = vadd.f32 %v2259, 1.0
        %v2309 = vadd.f32 %v2261, 1.0
        %v2310 = vadd.f32 %v2263, 1.0
        %v2311 = vadd.f32 %v2265, 1.0
        %v2312 = vadd.f32 %v2267, 1.0
        %v2313 = vadd.f32 %v2269, 1.0
        %v2314 = vadd.f32 %v2271, 1.0
        %v2315 = vadd.f32 %v2273, 1.0
        %v2316 = vadd.f32 %v2275, 1.0
        %v2317 = vadd.f32 %v2277, 1.0
        %v2318 = vadd.f32 %v2279, 1.0
        %v2319 = vadd.f32 %v2281, 1.0
        %v2320 = vadd.f32 %v2283, 1.0
        %v2321 = vadd.f32 %v2285, 1.0
        %v2322 = vadd.f32 %v2287, 1.0
        %v2323 = vadd.f32 %v2289, 1.0
        %v2324 = vadd.f32 %v2291, 1.0
        %v2325 = vadd.f32 %v2293, 1.0
        %v2326 = vrcp.pop %v2294
        %v2327 = vmul.f32 %v2294, %v2326
        %v2328 = vsub.f32 1.0, %v2327
        %v2329 = vmul.f32 %v2326, %v2328
        %v2330 = vadd.f32 %v2326, %v2329
        %vm2331 = vweird.f32 %v2294
        %vm2332 = vweird.f32 %v2326
        %vm2333 = vmor %vm2331, %vm2332
        %v2334 = vsel %vm2333, %v2326, %v2330
        %v2335 = vand.u32 2147483647, %v2294
        %vm2336 = vcmp.eq.f32.partialorder %v2335, 8.507059e+37
        %v2337 = vand.u32 %v2294, 2147483648
        %v2338 = vor.u32 1.1754944e-38, %v2337
        %v2339 = vsel %vm2336, %v2338, %v2334
        %v2340 = vmul.f32 1.0, %v2339
        %v2341 = vrcp.pop %v2295
        %v2342 = vmul.f32 %v2295, %v2341
        %v2343 = vsub.f32 1.0, %v2342
        %v2344 = vmul.f32 %v2341, %v2343
        %v2345 = vadd.f32 %v2341, %v2344
        %vm2346 = vweird.f32 %v2295
        %vm2347 = vweird.f32 %v2341
        %vm2348 = vmor %vm2346, %vm2347
        %v2349 = vsel %vm2348, %v2341, %v2345
        %v2350 = vand.u32 2147483647, %v2295
        %vm2351 = vcmp.eq.f32.partialorder %v2350, 8.507059e+37
        %v2352 = vand.u32 %v2295, 2147483648
        %v2353 = vor.u32 1.1754944e-38, %v2352
        %v2354 = vsel %vm2351, %v2353, %v2349
        %v2355 = vmul.f32 1.0, %v2354
        %v2356 = vrcp.pop %v2296
        %v2357 = vmul.f32 %v2296, %v2356
        %v2358 = vsub.f32 1.0, %v2357
        %v2359 = vmul.f32 %v2356, %v2358
        %v2360 = vadd.f32 %v2356, %v2359
        %vm2361 = vweird.f32 %v2296
        %vm2362 = vweird.f32 %v2356
        %vm2363 = vmor %vm2361, %vm2362
        %v2364 = vsel %vm2363, %v2356, %v2360
        %v2365 = vand.u32 2147483647, %v2296
        %vm2366 = vcmp.eq.f32.partialorder %v2365, 8.507059e+37
        %v2367 = vand.u32 %v2296, 2147483648
        %v2368 = vor.u32 1.1754944e-38, %v2367
        %v2369 = vsel %vm2366, %v2368, %v2364
        %v2370 = vmul.f32 1.0, %v2369
        %v2371 = vrcp.pop %v2297
        %v2372 = vmul.f32 %v2297, %v2371
        %v2373 = vsub.f32 1.0, %v2372
        %v2374 = vmul.f32 %v2371, %v2373
        %v2375 = vadd.f32 %v2371, %v2374
        %vm2376 = vweird.f32 %v2297
        %vm2377 = vweird.f32 %v2371
        %vm2378 = vmor %vm2376, %vm2377
        %v2379 = vsel %vm2378, %v2371, %v2375
        %v2380 = vand.u32 2147483647, %v2297
        %vm2381 = vcmp.eq.f32.partialorder %v2380, 8.507059e+37
        %v2382 = vand.u32 %v2297, 2147483648
        %v2383 = vor.u32 1.1754944e-38, %v2382
        %v2384 = vsel %vm2381, %v2383, %v2379
        %v2385 = vmul.f32 1.0, %v2384
        %v2386 = vrcp.pop %v2298
        %v2387 = vmul.f32 %v2298, %v2386
        %v2388 = vsub.f32 1.0, %v2387
        %v2389 = vmul.f32 %v2386, %v2388
        %v2390 = vadd.f32 %v2386, %v2389
        %vm2391 = vweird.f32 %v2298
        %vm2392 = vweird.f32 %v2386
        %vm2393 = vmor %vm2391, %vm2392
        %v2394 = vsel %vm2393, %v2386, %v2390
        %v2395 = vand.u32 2147483647, %v2298
        %vm2396 = vcmp.eq.f32.partialorder %v2395, 8.507059e+37
        %v2397 = vand.u32 %v2298, 2147483648
        %v2398 = vor.u32 1.1754944e-38, %v2397
        %v2399 = vsel %vm2396, %v2398, %v2394
        %v2400 = vmul.f32 1.0, %v2399
        %v2401 = vrcp.pop %v2299
        %v2402 = vmul.f32 %v2299, %v2401
        %v2403 = vsub.f32 1.0, %v2402
        %v2404 = vmul.f32 %v2401, %v2403
        %v2405 = vadd.f32 %v2401, %v2404
        %vm2406 = vweird.f32 %v2299
        %vm2407 = vweird.f32 %v2401
        %vm2408 = vmor %vm2406, %vm2407
        %v2409 = vsel %vm2408, %v2401, %v2405
        %v2410 = vand.u32 2147483647, %v2299
        %vm2411 = vcmp.eq.f32.partialorder %v2410, 8.507059e+37
        %v2412 = vand.u32 %v2299, 2147483648
        %v2413 = vor.u32 1.1754944e-38, %v2412
        %v2414 = vsel %vm2411, %v2413, %v2409
        %v2415 = vmul.f32 1.0, %v2414
        %v2416 = vrcp.pop %v2300
        %v2417 = vmul.f32 %v2300, %v2416
        %v2418 = vsub.f32 1.0, %v2417
        %v2419 = vmul.f32 %v2416, %v2418
        %v2420 = vadd.f32 %v2416, %v2419
        %vm2421 = vweird.f32 %v2300
        %vm2422 = vweird.f32 %v2416
        %vm2423 = vmor %vm2421, %vm2422
        %v2424 = vsel %vm2423, %v2416, %v2420
        %v2425 = vand.u32 2147483647, %v2300
        %vm2426 = vcmp.eq.f32.partialorder %v2425, 8.507059e+37
        %v2427 = vand.u32 %v2300, 2147483648
        %v2428 = vor.u32 1.1754944e-38, %v2427
        %v2429 = vsel %vm2426, %v2428, %v2424
        %v2430 = vmul.f32 1.0, %v2429
        %v2431 = vrcp.pop %v2301
        %v2432 = vmul.f32 %v2301, %v2431
        %v2433 = vsub.f32 1.0, %v2432
        %v2434 = vmul.f32 %v2431, %v2433
        %v2435 = vadd.f32 %v2431, %v2434
        %vm2436 = vweird.f32 %v2301
        %vm2437 = vweird.f32 %v2431
        %vm2438 = vmor %vm2436, %vm2437
        %v2439 = vsel %vm2438, %v2431, %v2435
        %v2440 = vand.u32 2147483647, %v2301
        %vm2441 = vcmp.eq.f32.partialorder %v2440, 8.507059e+37
        %v2442 = vand.u32 %v2301, 2147483648
        %v2443 = vor.u32 1.1754944e-38, %v2442
        %v2444 = vsel %vm2441, %v2443, %v2439
        %v2445 = vmul.f32 1.0, %v2444
        %v2446 = vrcp.pop %v2302
        %v2447 = vmul.f32 %v2302, %v2446
        %v2448 = vsub.f32 1.0, %v2447
        %v2449 = vmul.f32 %v2446, %v2448
        %v2450 = vadd.f32 %v2446, %v2449
        %vm2451 = vweird.f32 %v2302
        %vm2452 = vweird.f32 %v2446
        %vm2453 = vmor %vm2451, %vm2452
        %v2454 = vsel %vm2453, %v2446, %v2450
        %v2455 = vand.u32 2147483647, %v2302
        %vm2456 = vcmp.eq.f32.partialorder %v2455, 8.507059e+37
        %v2457 = vand.u32 %v2302, 2147483648
        %v2458 = vor.u32 1.1754944e-38, %v2457
        %v2459 = vsel %vm2456, %v2458, %v2454
        %v2460 = vmul.f32 1.0, %v2459
        %v2461 = vrcp.pop %v2303
        %v2462 = vmul.f32 %v2303, %v2461
        %v2463 = vsub.f32 1.0, %v2462
        %v2464 = vmul.f32 %v2461, %v2463
        %v2465 = vadd.f32 %v2461, %v2464
        %vm2466 = vweird.f32 %v2303
        %vm2467 = vweird.f32 %v2461
        %vm2468 = vmor %vm2466, %vm2467
        %v2469 = vsel %vm2468, %v2461, %v2465
        %v2470 = vand.u32 2147483647, %v2303
        %vm2471 = vcmp.eq.f32.partialorder %v2470, 8.507059e+37
        %v2472 = vand.u32 %v2303, 2147483648
        %v2473 = vor.u32 1.1754944e-38, %v2472
        %v2474 = vsel %vm2471, %v2473, %v2469
        %v2475 = vmul.f32 1.0, %v2474
        %v2476 = vrcp.pop %v2304
        %v2477 = vmul.f32 %v2304, %v2476
        %v2478 = vsub.f32 1.0, %v2477
        %v2479 = vmul.f32 %v2476, %v2478
        %v2480 = vadd.f32 %v2476, %v2479
        %vm2481 = vweird.f32 %v2304
        %vm2482 = vweird.f32 %v2476
        %vm2483 = vmor %vm2481, %vm2482
        %v2484 = vsel %vm2483, %v2476, %v2480
        %v2485 = vand.u32 2147483647, %v2304
        %vm2486 = vcmp.eq.f32.partialorder %v2485, 8.507059e+37
        %v2487 = vand.u32 %v2304, 2147483648
        %v2488 = vor.u32 1.1754944e-38, %v2487
        %v2489 = vsel %vm2486, %v2488, %v2484
        %v2490 = vmul.f32 1.0, %v2489
        %v2491 = vrcp.pop %v2305
        %v2492 = vmul.f32 %v2305, %v2491
        %v2493 = vsub.f32 1.0, %v2492
        %v2494 = vmul.f32 %v2491, %v2493
        %v2495 = vadd.f32 %v2491, %v2494
        %vm2496 = vweird.f32 %v2305
        %vm2497 = vweird.f32 %v2491
        %vm2498 = vmor %vm2496, %vm2497
        %v2499 = vsel %vm2498, %v2491, %v2495
        %v2500 = vand.u32 2147483647, %v2305
        %vm2501 = vcmp.eq.f32.partialorder %v2500, 8.507059e+37
        %v2502 = vand.u32 %v2305, 2147483648
        %v2503 = vor.u32 1.1754944e-38, %v2502
        %v2504 = vsel %vm2501, %v2503, %v2499
        %v2505 = vmul.f32 1.0, %v2504
        %v2506 = vrcp.pop %v2306
        %v2507 = vmul.f32 %v2306, %v2506
        %v2508 = vsub.f32 1.0, %v2507
        %v2509 = vmul.f32 %v2506, %v2508
        %v2510 = vadd.f32 %v2506, %v2509
        %vm2511 = vweird.f32 %v2306
        %vm2512 = vweird.f32 %v2506
        %vm2513 = vmor %vm2511, %vm2512
        %v2514 = vsel %vm2513, %v2506, %v2510
        %v2515 = vand.u32 2147483647, %v2306
        %vm2516 = vcmp.eq.f32.partialorder %v2515, 8.507059e+37
        %v2517 = vand.u32 %v2306, 2147483648
        %v2518 = vor.u32 1.1754944e-38, %v2517
        %v2519 = vsel %vm2516, %v2518, %v2514
        %v2520 = vmul.f32 1.0, %v2519
        %v2521 = vrcp.pop %v2307
        %v2522 = vmul.f32 %v2307, %v2521
        %v2523 = vsub.f32 1.0, %v2522
        %v2524 = vmul.f32 %v2521, %v2523
        %v2525 = vadd.f32 %v2521, %v2524
        %vm2526 = vweird.f32 %v2307
        %vm2527 = vweird.f32 %v2521
        %vm2528 = vmor %vm2526, %vm2527
        %v2529 = vsel %vm2528, %v2521, %v2525
        %v2530 = vand.u32 2147483647, %v2307
        %vm2531 = vcmp.eq.f32.partialorder %v2530, 8.507059e+37
        %v2532 = vand.u32 %v2307, 2147483648
        %v2533 = vor.u32 1.1754944e-38, %v2532
        %v2534 = vsel %vm2531, %v2533, %v2529
        %v2535 = vmul.f32 1.0, %v2534
        %v2536 = vrcp.pop %v2308
        %v2537 = vmul.f32 %v2308, %v2536
        %v2538 = vsub.f32 1.0, %v2537
        %v2539 = vmul.f32 %v2536, %v2538
        %v2540 = vadd.f32 %v2536, %v2539
        %vm2541 = vweird.f32 %v2308
        %vm2542 = vweird.f32 %v2536
        %vm2543 = vmor %vm2541, %vm2542
        %v2544 = vsel %vm2543, %v2536, %v2540
        %v2545 = vand.u32 2147483647, %v2308
        %vm2546 = vcmp.eq.f32.partialorder %v2545, 8.507059e+37
        %v2547 = vand.u32 %v2308, 2147483648
        %v2548 = vor.u32 1.1754944e-38, %v2547
        %v2549 = vsel %vm2546, %v2548, %v2544
        %v2550 = vmul.f32 1.0, %v2549
        %v2551 = vrcp.pop %v2309
        %v2552 = vmul.f32 %v2309, %v2551
        %v2553 = vsub.f32 1.0, %v2552
        %v2554 = vmul.f32 %v2551, %v2553
        %v2555 = vadd.f32 %v2551, %v2554
        %vm2556 = vweird.f32 %v2309
        %vm2557 = vweird.f32 %v2551
        %vm2558 = vmor %vm2556, %vm2557
        %v2559 = vsel %vm2558, %v2551, %v2555
        %v2560 = vand.u32 2147483647, %v2309
        %vm2561 = vcmp.eq.f32.partialorder %v2560, 8.507059e+37
        %v2562 = vand.u32 %v2309, 2147483648
        %v2563 = vor.u32 1.1754944e-38, %v2562
        %v2564 = vsel %vm2561, %v2563, %v2559
        %v2565 = vmul.f32 1.0, %v2564
        %v2566 = vrcp.pop %v2310
        %v2567 = vmul.f32 %v2310, %v2566
        %v2568 = vsub.f32 1.0, %v2567
        %v2569 = vmul.f32 %v2566, %v2568
        %v2570 = vadd.f32 %v2566, %v2569
        %vm2571 = vweird.f32 %v2310
        %vm2572 = vweird.f32 %v2566
        %vm2573 = vmor %vm2571, %vm2572
        %v2574 = vsel %vm2573, %v2566, %v2570
        %v2575 = vand.u32 2147483647, %v2310
        %vm2576 = vcmp.eq.f32.partialorder %v2575, 8.507059e+37
        %v2577 = vand.u32 %v2310, 2147483648
        %v2578 = vor.u32 1.1754944e-38, %v2577
        %v2579 = vsel %vm2576, %v2578, %v2574
        %v2580 = vmul.f32 1.0, %v2579
        %v2581 = vrcp.pop %v2311
        %v2582 = vmul.f32 %v2311, %v2581
        %v2583 = vsub.f32 1.0, %v2582
        %v2584 = vmul.f32 %v2581, %v2583
        %v2585 = vadd.f32 %v2581, %v2584
        %vm2586 = vweird.f32 %v2311
        %vm2587 = vweird.f32 %v2581
        %vm2588 = vmor %vm2586, %vm2587
        %v2589 = vsel %vm2588, %v2581, %v2585
        %v2590 = vand.u32 2147483647, %v2311
        %vm2591 = vcmp.eq.f32.partialorder %v2590, 8.507059e+37
        %v2592 = vand.u32 %v2311, 2147483648
        %v2593 = vor.u32 1.1754944e-38, %v2592
        %v2594 = vsel %vm2591, %v2593, %v2589
        %v2595 = vmul.f32 1.0, %v2594
        %v2596 = vrcp.pop %v2312
        %v2597 = vmul.f32 %v2312, %v2596
        %v2598 = vsub.f32 1.0, %v2597
        %v2599 = vmul.f32 %v2596, %v2598
        %v2600 = vadd.f32 %v2596, %v2599
        %vm2601 = vweird.f32 %v2312
        %vm2602 = vweird.f32 %v2596
        %vm2603 = vmor %vm2601, %vm2602
        %v2604 = vsel %vm2603, %v2596, %v2600
        %v2605 = vand.u32 2147483647, %v2312
        %vm2606 = vcmp.eq.f32.partialorder %v2605, 8.507059e+37
        %v2607 = vand.u32 %v2312, 2147483648
        %v2608 = vor.u32 1.1754944e-38, %v2607
        %v2609 = vsel %vm2606, %v2608, %v2604
        %v2610 = vmul.f32 1.0, %v2609
        %v2611 = vrcp.pop %v2313
        %v2612 = vmul.f32 %v2313, %v2611
        %v2613 = vsub.f32 1.0, %v2612
        %v2614 = vmul.f32 %v2611, %v2613
        %v2615 = vadd.f32 %v2611, %v2614
        %vm2616 = vweird.f32 %v2313
        %vm2617 = vweird.f32 %v2611
        %vm2618 = vmor %vm2616, %vm2617
        %v2619 = vsel %vm2618, %v2611, %v2615
        %v2620 = vand.u32 2147483647, %v2313
        %vm2621 = vcmp.eq.f32.partialorder %v2620, 8.507059e+37
        %v2622 = vand.u32 %v2313, 2147483648
        %v2623 = vor.u32 1.1754944e-38, %v2622
        %v2624 = vsel %vm2621, %v2623, %v2619
        %v2625 = vmul.f32 1.0, %v2624
        %v2626 = vrcp.pop %v2314
        %v2627 = vmul.f32 %v2314, %v2626
        %v2628 = vsub.f32 1.0, %v2627
        %v2629 = vmul.f32 %v2626, %v2628
        %v2630 = vadd.f32 %v2626, %v2629
        %vm2631 = vweird.f32 %v2314
        %vm2632 = vweird.f32 %v2626
        %vm2633 = vmor %vm2631, %vm2632
        %v2634 = vsel %vm2633, %v2626, %v2630
        %v2635 = vand.u32 2147483647, %v2314
        %vm2636 = vcmp.eq.f32.partialorder %v2635, 8.507059e+37
        %v2637 = vand.u32 %v2314, 2147483648
        %v2638 = vor.u32 1.1754944e-38, %v2637
        %v2639 = vsel %vm2636, %v2638, %v2634
        %v2640 = vmul.f32 1.0, %v2639
        %v2641 = vrcp.pop %v2315
        %v2642 = vmul.f32 %v2315, %v2641
        %v2643 = vsub.f32 1.0, %v2642
        %v2644 = vmul.f32 %v2641, %v2643
        %v2645 = vadd.f32 %v2641, %v2644
        %vm2646 = vweird.f32 %v2315
        %vm2647 = vweird.f32 %v2641
        %vm2648 = vmor %vm2646, %vm2647
        %v2649 = vsel %vm2648, %v2641, %v2645
        %v2650 = vand.u32 2147483647, %v2315
        %vm2651 = vcmp.eq.f32.partialorder %v2650, 8.507059e+37
        %v2652 = vand.u32 %v2315, 2147483648
        %v2653 = vor.u32 1.1754944e-38, %v2652
        %v2654 = vsel %vm2651, %v2653, %v2649
        %v2655 = vmul.f32 1.0, %v2654
        %v2656 = vrcp.pop %v2316
        %v2657 = vmul.f32 %v2316, %v2656
        %v2658 = vsub.f32 1.0, %v2657
        %v2659 = vmul.f32 %v2656, %v2658
        %v2660 = vadd.f32 %v2656, %v2659
        %vm2661 = vweird.f32 %v2316
        %vm2662 = vweird.f32 %v2656
        %vm2663 = vmor %vm2661, %vm2662
        %v2664 = vsel %vm2663, %v2656, %v2660
        %v2665 = vand.u32 2147483647, %v2316
        %vm2666 = vcmp.eq.f32.partialorder %v2665, 8.507059e+37
        %v2667 = vand.u32 %v2316, 2147483648
        %v2668 = vor.u32 1.1754944e-38, %v2667
        %v2669 = vsel %vm2666, %v2668, %v2664
        %v2670 = vmul.f32 1.0, %v2669
        %v2671 = vrcp.pop %v2317
        %v2672 = vmul.f32 %v2317, %v2671
        %v2673 = vsub.f32 1.0, %v2672
        %v2674 = vmul.f32 %v2671, %v2673
        %v2675 = vadd.f32 %v2671, %v2674
        %vm2676 = vweird.f32 %v2317
        %vm2677 = vweird.f32 %v2671
        %vm2678 = vmor %vm2676, %vm2677
        %v2679 = vsel %vm2678, %v2671, %v2675
        %v2680 = vand.u32 2147483647, %v2317
        %vm2681 = vcmp.eq.f32.partialorder %v2680, 8.507059e+37
        %v2682 = vand.u32 %v2317, 2147483648
        %v2683 = vor.u32 1.1754944e-38, %v2682
        %v2684 = vsel %vm2681, %v2683, %v2679
        %v2685 = vmul.f32 1.0, %v2684
        %v2686 = vrcp.pop %v2318
        %v2687 = vmul.f32 %v2318, %v2686
        %v2688 = vsub.f32 1.0, %v2687
        %v2689 = vmul.f32 %v2686, %v2688
        %v2690 = vadd.f32 %v2686, %v2689
        %vm2691 = vweird.f32 %v2318
        %vm2692 = vweird.f32 %v2686
        %vm2693 = vmor %vm2691, %vm2692
        %v2694 = vsel %vm2693, %v2686, %v2690
        %v2695 = vand.u32 2147483647, %v2318
        %vm2696 = vcmp.eq.f32.partialorder %v2695, 8.507059e+37
        %v2697 = vand.u32 %v2318, 2147483648
        %v2698 = vor.u32 1.1754944e-38, %v2697
        %v2699 = vsel %vm2696, %v2698, %v2694
        %v2700 = vmul.f32 1.0, %v2699
        %v2701 = vrcp.pop %v2319
        %v2702 = vmul.f32 %v2319, %v2701
        %v2703 = vsub.f32 1.0, %v2702
        %v2704 = vmul.f32 %v2701, %v2703
        %v2705 = vadd.f32 %v2701, %v2704
        %vm2706 = vweird.f32 %v2319
        %vm2707 = vweird.f32 %v2701
        %vm2708 = vmor %vm2706, %vm2707
        %v2709 = vsel %vm2708, %v2701, %v2705
        %v2710 = vand.u32 2147483647, %v2319
        %vm2711 = vcmp.eq.f32.partialorder %v2710, 8.507059e+37
        %v2712 = vand.u32 %v2319, 2147483648
        %v2713 = vor.u32 1.1754944e-38, %v2712
        %v2714 = vsel %vm2711, %v2713, %v2709
        %v2715 = vmul.f32 1.0, %v2714
        %v2716 = vrcp.pop %v2320
        %v2717 = vmul.f32 %v2320, %v2716
        %v2718 = vsub.f32 1.0, %v2717
        %v2719 = vmul.f32 %v2716, %v2718
        %v2720 = vadd.f32 %v2716, %v2719
        %vm2721 = vweird.f32 %v2320
        %vm2722 = vweird.f32 %v2716
        %vm2723 = vmor %vm2721, %vm2722
        %v2724 = vsel %vm2723, %v2716, %v2720
        %v2725 = vand.u32 2147483647, %v2320
        %vm2726 = vcmp.eq.f32.partialorder %v2725, 8.507059e+37
        %v2727 = vand.u32 %v2320, 2147483648
        %v2728 = vor.u32 1.1754944e-38, %v2727
        %v2729 = vsel %vm2726, %v2728, %v2724
        %v2730 = vmul.f32 1.0, %v2729
        %v2731 = vrcp.pop %v2321
        %v2732 = vmul.f32 %v2321, %v2731
        %v2733 = vsub.f32 1.0, %v2732
        %v2734 = vmul.f32 %v2731, %v2733
        %v2735 = vadd.f32 %v2731, %v2734
        %vm2736 = vweird.f32 %v2321
        %vm2737 = vweird.f32 %v2731
        %vm2738 = vmor %vm2736, %vm2737
        %v2739 = vsel %vm2738, %v2731, %v2735
        %v2740 = vand.u32 2147483647, %v2321
        %vm2741 = vcmp.eq.f32.partialorder %v2740, 8.507059e+37
        %v2742 = vand.u32 %v2321, 2147483648
        %v2743 = vor.u32 1.1754944e-38, %v2742
        %v2744 = vsel %vm2741, %v2743, %v2739
        %v2745 = vmul.f32 1.0, %v2744
        %v2746 = vrcp.pop %v2322
        %v2747 = vmul.f32 %v2322, %v2746
        %v2748 = vsub.f32 1.0, %v2747
        %v2749 = vmul.f32 %v2746, %v2748
        %v2750 = vadd.f32 %v2746, %v2749
        %vm2751 = vweird.f32 %v2322
        %vm2752 = vweird.f32 %v2746
        %vm2753 = vmor %vm2751, %vm2752
        %v2754 = vsel %vm2753, %v2746, %v2750
        %v2755 = vand.u32 2147483647, %v2322
        %vm2756 = vcmp.eq.f32.partialorder %v2755, 8.507059e+37
        %v2757 = vand.u32 %v2322, 2147483648
        %v2758 = vor.u32 1.1754944e-38, %v2757
        %v2759 = vsel %vm2756, %v2758, %v2754
        %v2760 = vmul.f32 1.0, %v2759
        %v2761 = vrcp.pop %v2323
        %v2762 = vmul.f32 %v2323, %v2761
        %v2763 = vsub.f32 1.0, %v2762
        %v2764 = vmul.f32 %v2761, %v2763
        %v2765 = vadd.f32 %v2761, %v2764
        %vm2766 = vweird.f32 %v2323
        %vm2767 = vweird.f32 %v2761
        %vm2768 = vmor %vm2766, %vm2767
        %v2769 = vsel %vm2768, %v2761, %v2765
        %v2770 = vand.u32 2147483647, %v2323
        %vm2771 = vcmp.eq.f32.partialorder %v2770, 8.507059e+37
        %v2772 = vand.u32 %v2323, 2147483648
        %v2773 = vor.u32 1.1754944e-38, %v2772
        %v2774 = vsel %vm2771, %v2773, %v2769
        %v2775 = vmul.f32 1.0, %v2774
        %v2776 = vrcp.pop %v2324
        %v2777 = vmul.f32 %v2324, %v2776
        %v2778 = vsub.f32 1.0, %v2777
        %v2779 = vmul.f32 %v2776, %v2778
        %v2780 = vadd.f32 %v2776, %v2779
        %vm2781 = vweird.f32 %v2324
        %vm2782 = vweird.f32 %v2776
        %vm2783 = vmor %vm2781, %vm2782
        %v2784 = vsel %vm2783, %v2776, %v2780
        %v2785 = vand.u32 2147483647, %v2324
        %vm2786 = vcmp.eq.f32.partialorder %v2785, 8.507059e+37
        %v2787 = vand.u32 %v2324, 2147483648
        %v2788 = vor.u32 1.1754944e-38, %v2787
        %v2789 = vsel %vm2786, %v2788, %v2784
        %v2790 = vmul.f32 1.0, %v2789
        %v2791 = vrcp.pop %v2325
        %v2792 = vmul.f32 %v2325, %v2791
        %v2793 = vsub.f32 1.0, %v2792
        %v2794 = vmul.f32 %v2791, %v2793
        %v2795 = vadd.f32 %v2791, %v2794
        %vm2796 = vweird.f32 %v2325
        %vm2797 = vweird.f32 %v2791
        %vm2798 = vmor %vm2796, %vm2797
        %v2799 = vsel %vm2798, %v2791, %v2795
        %v2800 = vand.u32 2147483647, %v2325
        %vm2801 = vcmp.eq.f32.partialorder %v2800, 8.507059e+37
        %v2802 = vand.u32 %v2325, 2147483648
        %v2803 = vor.u32 1.1754944e-38, %v2802
        %v2804 = vsel %vm2801, %v2803, %v2799
        %v2805 = vmul.f32 1.0, %v2804
        %2806 = vst [vmem:[%s348] sm:$0xff] %v2340
        %2807 = vst [vmem:[%s348 + $0x8] sm:$0xff] %v2355
        %2808 = vst [vmem:[%s348 + $0x10] sm:$0xff] %v2370
        %2809 = vst [vmem:[%s348 + $0x18] sm:$0xff] %v2385
        %2810 = vst [vmem:[%s348 + $0x20] sm:$0xff] %v2400
        %2811 = vst [vmem:[%s348 + $0x28] sm:$0xff] %v2415
        %2812 = vst [vmem:[%s348 + $0x30] sm:$0xff] %v2430
        %2813 = vst [vmem:[%s348 + $0x38] sm:$0xff] %v2445
        %2814 = vst [vmem:[%s348 + $0x40] sm:$0xff] %v2460
        %2815 = vst [vmem:[%s348 + $0x48] sm:$0xff] %v2475
        %2816 = vst [vmem:[%s348 + $0x50] sm:$0xff] %v2490
        %2817 = vst [vmem:[%s348 + $0x58] sm:$0xff] %v2505
        %2818 = vst [vmem:[%s348 + $0x60] sm:$0xff] %v2520
        %2819 = vst [vmem:[%s348 + $0x68] sm:$0xff] %v2535
        %2820 = vst [vmem:[%s348 + $0x70] sm:$0xff] %v2550
        %2821 = vst [vmem:[%s348 + $0x78] sm:$0xff] %v2565
        %2822 = vst [vmem:[%s348 + $0x80] sm:$0xff] %v2580
        %2823 = vst [vmem:[%s348 + $0x88] sm:$0xff] %v2595
        %2824 = vst [vmem:[%s348 + $0x90] sm:$0xff] %v2610
        %2825 = vst [vmem:[%s348 + $0x98] sm:$0xff] %v2625
        %2826 = vst [vmem:[%s348 + $0xa0] sm:$0xff] %v2640
        %2827 = vst [vmem:[%s348 + $0xa8] sm:$0xff] %v2655
        %2828 = vst [vmem:[%s348 + $0xb0] sm:$0xff] %v2670
        %2829 = vst [vmem:[%s348 + $0xb8] sm:$0xff] %v2685
        %2830 = vst [vmem:[%s348 + $0xc0] sm:$0xff] %v2700
        %2831 = vst [vmem:[%s348 + $0xc8] sm:$0xff] %v2715
        %2832 = vst [vmem:[%s348 + $0xd0] sm:$0xff] %v2730
        %2833 = vst [vmem:[%s348 + $0xd8] sm:$0xff] %v2745
        %2834 = vst [vmem:[%s348 + $0xe0] sm:$0xff] %v2760
        %2835 = vst [vmem:[%s348 + $0xe8] sm:$0xff] %v2775
        %2836 = vst [vmem:[%s348 + $0xf0] sm:$0xff] %v2790
        %2837 = vst [vmem:[%s348 + $0xf8] sm:$0xff] %v2805
        %s2838 = sand.u32 %s186, 1
        %s2839 = scalar_lea.sflag [#allocation4], %s2838
        %s2840 = sand.u32 %s186, 1
        %s2841 = smul.addr %s2840, 256
        %s2842 = scalar_lea.vmem [#allocation10], %s2841
        // Predicated region
        $region65: #{tpu_custom_call.1} parent=47 // pred_check
          %p2843 = pneg %p196
        $region66: #{tpu_custom_call.1} parent=47 // pred_check_branch
          %2845 = sbr.rel (%p2843) target = $region68
        $region67: #{tpu_custom_call.1} parent=47 // pred_region
          %s2846 = smul.u32 32, %s26
          %2848 = vsyncadd %s2839, 0
          %s2849 = smul.addr %s2846, 8
          %s2850 = scalar_lea.hbm %s7, %s2849
          %s2851 = sshll.u32 %s2842, 4
          %s2852 = int_to_ptr.vmem [resolvable:$true] %s2851
          %s2853 = sshll.u32 %s2850, 4
          %s2854 = int_to_ptr.hbm [resolvable:$true] %s2853
          %2859 = dma.vmem_to_hbm [thread:$0]  %s2852, 4096, %s2854, %s2839, 128, 128, 8
        $region68: #{tpu_custom_call.1} parent=47 // pred_fallthru
          _
      $region48: #{tpu_custom_call.1} parent=5 // pred_fallthru
        _
      %p2860 = scmp.le.s32.totalorder 2, %s21
      // Predicated region
      $region69: #{tpu_custom_call.1} parent=5 // pred_check
        %p2861 = pneg %p2860
      $region70: #{tpu_custom_call.1} parent=5 // pred_check_branch
        %2863 = sbr.rel (%p2861) target = $region72
      $region71: #{tpu_custom_call.1} parent=5 // pred_region
        %s2864 = ssub.s32 %s21, 2
        // Predicated region
        $region73: #{tpu_custom_call.1} parent=71 // pred_check
          %p2865 = pneg %p202
        $region74: #{tpu_custom_call.1} parent=71 // pred_check_branch
          %2867 = sbr.rel (%p2865) target = $region76
        $region75: #{tpu_custom_call.1} parent=71 // pred_region
          %s2868 = sand.u32 %s187, 1
          %s2869 = scalar_lea.sflag [#allocation4], %s2868
          %s2870 = sand.u32 %s187, 1
          %s2871 = smul.addr %s2870, 256
          %s2872 = scalar_lea.vmem [#allocation10], %s2871
          %2874 = dma.done %s2869, 4096
        $region76: #{tpu_custom_call.1} parent=71 // pred_fallthru
          _
      $region72: #{tpu_custom_call.1} parent=5 // pred_fallthru
        _
    $region6: #{tpu_custom_call.1} parent=1 // loop_footer
      %s25 = sadd.s32 1, %s21
    $region7: #{tpu_custom_call.1} parent=1 // loop_footer_branch
      %20 = sbr.rel target = $region3
    $region8: #{tpu_custom_call.1} parent=1 // loop_exit
      _
    %2875 = vsyncpa [#allocation3], 1
    %s2876 = scalar_lea.sflag [#allocation3], 1
    %2877 = vsyncpa %s2876, 1
    %2878 = vsyncpa [#allocation6], 1
    %2879 = vsyncpa [#allocation9], 1
    %2880 = vsyncpa [#allocation4], 1
    %s2881 = scalar_lea.sflag [#allocation4], 1
    %2882 = vsyncpa %s2881, 1

</llo_original>
